<compile_context>
chip_gen: v5e
topology: v5e:2x2
jax: 0.10.0
libtpu: 0.0.40
codegen_flags: <defaults>
</compile_context>

<pallas_src>
import jax
import jax.numpy as jnp
from jax import lax
from jax.experimental import pallas as pl
from jax.experimental.pallas import tpu as pltpu


def _divisor_tile(n, cap):
    """Largest divisor of n that is <= cap and a multiple of 8 (n itself if n <= cap)."""
    if n <= cap:
        return n
    for t in range(cap, 7, -1):
        if n % t == 0 and t % 8 == 0:
            return t
    raise ValueError(
        f"N={n} has no tile divisor <= {cap} that is a multiple of 8; pad N instead.")


def _pick_q_tile(n, cap, batch):
    t = _divisor_tile(n, cap)
    # v7x megacore: keep >= 2 "parallel" grid blocks so both TensorCores get work.
    if batch * (n // t) < 2:
        for cand in range(min(t - 1, cap), 7, -1):
            if n % cand == 0 and cand % 8 == 0:
                return cand
    return t


def _self_attn_kernel(xq_ref, xkv_ref, mw_ref, wkbq_ref, wv_ref, bv_ref,
                      gamma_ref, o_ref, qm_ref, m_ref, acc_ref):
    ki = pl.program_id(2)

    @pl.when(ki == 0)
    def _init():
        # Projected query tile: qm_i = x_i (Wq Wk^T) + (Wk bq)   -> (TQ, Ckv)
        # The last column of mw / last entry of wkbq are zero, so qm[:, -1] == 0
        # and the all-ones KV lane never leaks into the energy matmul.
        xq_bf = xq_ref[0].astype(jnp.bfloat16)
        qm = jnp.dot(xq_bf, mw_ref[...],
                     preferred_element_type=jnp.float32) + wkbq_ref[...]
        qm_ref[...] = qm.astype(jnp.bfloat16)
        m_ref[...] = jnp.full_like(m_ref, -jnp.inf)
        acc_ref[...] = jnp.zeros_like(acc_ref)

    xkv_bf = xkv_ref[0]                                   # (TK, Ckv) bf16, straight from HBM

    # energy[i, j] = qm_i . x_j — contraction over channels; MXU consumes the
    # transposed rhs natively (no explicit k.T materialization).
    energy = lax.dot_general(
        qm_ref[...], xkv_bf,
        dimension_numbers=(((1,), (1,)), ((), ())),
        preferred_element_type=jnp.float32)               # (TQ, TK)

    # Online softmax update. Row max stays on the XLU; the row sum is produced
    # by the MXU via the all-ones KV lane below.
    m_prev = m_ref[...]
    m_new = jnp.maximum(m_prev, jnp.max(energy, axis=-1, keepdims=True))
    alpha = jnp.exp(m_prev - m_new)                       # (TQ, 1)
    # (On v6e/v7x a bf16-output exp would shave EUP/VPU work; kept f32+cast for
    #  v5e compatibility and accuracy.)
    p = jnp.exp(energy - m_new).astype(jnp.bfloat16)      # (TQ, TK)

    # Deferred value projection: the inner loop only accumulates P @ x_kv; the
    # trailing all-ones lane of x_kv makes acc[:, -1] the softmax denominator.
    acc_ref[...] = alpha * acc_ref[...] + jnp.dot(
        p, xkv_bf, preferred_element_type=jnp.float32)
    m_ref[...] = m_new

    @pl.when(ki == pl.num_programs(2) - 1)
    def _finalize():
        acc = acc_ref[...]                                # (TQ, Ckv)
        l = acc[:, -1:]                                   # row-sum from the MXU
        inv_l = pl.reciprocal(l, approx=True)             # EUP; approx=False for exact parity
        # out = (softmax(E) @ x) Wv + bv.  The ones lane of ctx (== 1 after
        # normalization) hits the zero row of the extended Wv.
        ctx = (acc * inv_l).astype(jnp.bfloat16)          # (TQ, Ckv)
        attn_out = jnp.dot(ctx, wv_ref[...],
                           preferred_element_type=jnp.float32) + bv_ref[...]
        o_ref[0] = (gamma_ref[0] * attn_out + xq_ref[0]).astype(o_ref.dtype)


def self_attention_pallas(x_nchw, wq, bq, wk, bk, wv, bv, gamma, *,
                          tq=512, tk=512, kv_buffers=2):
    """x_nchw: (B, C, H, W) f32.  wq/wk: (C, C//8); wv: (C, C); gamma: (1,)."""
    B, C, H, W = x_nchw.shape
    N = H * W

    TQ = _pick_q_tile(N, tq, B)
    TK = _divisor_tile(N, tk)
    assert N % TQ == 0 and N % TK == 0

    # Fold the Q/K 1x1 convs into the energy matmul (softmax-invariant row-constant
    # terms dropped):
    #   (x_i Wq + bq).(x_j Wk + bk) = x_i (Wq Wk^T) x_j^T + x_j.(Wk bq) + const_i
    mw = wq.astype(jnp.float32) @ wk.astype(jnp.float32).T    # (C, C)
    wkbq = wk.astype(jnp.float32) @ bq.astype(jnp.float32)    # (C,)

    # Channels are NOT padded to 128 (block dim == full array dim is allowed).
    # One extra all-ones lane is appended to the bf16 KV stream so P @ x_kv also
    # produces the softmax row-sum; the matching Wv row / mw column are zero.
    Ckv = C + 1

    # NCHW -> (B, N, C): spatial positions on sublanes, channels on lanes.
    # TODO(synk): a (C, N)-native finalize/out_spec would remove these wrapper
    # transposes (one full HBM round trip each way).
    x_nc = jnp.transpose(x_nchw.reshape(B, C, N), (0, 2, 1)).astype(jnp.float32)
    x_kv = jnp.concatenate(
        [x_nc, jnp.ones((B, N, 1), jnp.float32)], axis=-1).astype(jnp.bfloat16)

    mw_bf = jnp.concatenate(
        [mw, jnp.zeros((C, 1), jnp.float32)], axis=-1).astype(jnp.bfloat16)  # (C, Ckv)
    wkbq_ext = jnp.concatenate(
        [wkbq, jnp.zeros((1,), jnp.float32)]).reshape(1, Ckv)                # (1, Ckv)
    wv_bf = jnp.concatenate(
        [wv.astype(jnp.float32), jnp.zeros((1, C), jnp.float32)],
        axis=0).astype(jnp.bfloat16)                                         # (Ckv, C)
    bv2 = bv.astype(jnp.float32).reshape(1, C)
    gamma1 = gamma.reshape(1).astype(jnp.float32)

    kv_kwargs = {}
    if kv_buffers != 2:   # v5e: deepen the KV pipeline if its DMA is still exposed
        kv_kwargs["pipeline_mode"] = pl.Buffered(kv_buffers)

    grid = (B, N // TQ, N // TK)
    out_nc = pl.pallas_call(
        _self_attn_kernel,
        out_shape=jax.ShapeDtypeStruct((B, N, C), jnp.float32),
        grid_spec=pltpu.PrefetchScalarGridSpec(
            num_scalar_prefetch=0,
            grid=grid,
            in_specs=[
                pl.BlockSpec((1, TQ, C), lambda b, qi, ki: (b, qi, 0)),     # x f32 (Q proj + residual)
                pl.BlockSpec((1, TK, Ckv), lambda b, qi, ki: (b, ki, 0),    # x bf16 + ones lane (KV)
                             **kv_kwargs),
                pl.BlockSpec((C, Ckv), lambda b, qi, ki: (0, 0)),           # [Wq Wk^T | 0] (bf16)
                pl.BlockSpec((1, Ckv), lambda b, qi, ki: (0, 0)),           # [Wk bq | 0]
                pl.BlockSpec((Ckv, C), lambda b, qi, ki: (0, 0)),           # [Wv ; 0] (bf16)
                pl.BlockSpec((1, C), lambda b, qi, ki: (0, 0)),             # bv
                pl.BlockSpec(memory_space=pltpu.MemorySpace.SMEM),          # gamma
            ],
            out_specs=pl.BlockSpec((1, TQ, C), lambda b, qi, ki: (b, qi, 0)),
            scratch_shapes=[
                pltpu.VMEM((TQ, Ckv), jnp.bfloat16),   # projected query tile
                pltpu.VMEM((TQ, 1), jnp.float32),      # running max
                pltpu.VMEM((TQ, Ckv), jnp.float32),    # context + row-sum accumulator
            ]),
        compiler_params=pltpu.CompilerParams(
            dimension_semantics=("parallel", "parallel", "arbitrary")),
    )(x_nc, x_kv, mw_bf, wkbq_ext, wv_bf, bv2, gamma1)

    # (B, N, C) -> (B, C, H, W).
    return jnp.transpose(out_nc, (0, 2, 1)).reshape(B, C, H, W)


def _reference_jax(x, wq, bq, wk, bk, wv, bv, gamma):
    """Pure-JAX reference mirroring the PyTorch forward exactly."""
    B, C, H, W = x.shape
    N = H * W
    xf = x.reshape(B, C, N).astype(jnp.float32)                 # (B, C, N)
    q = jnp.einsum('bcn,cd->bdn', xf, wq) + bq[None, :, None]   # (B, Cq, N)
    k = jnp.einsum('bcn,cd->bdn', xf, wk) + bk[None, :, None]
    v = jnp.einsum('bcn,cd->bdn', xf, wv) + bv[None, :, None]   # (B, C, N)
    energy = jnp.einsum('bdn,bdm->bnm', q, k)                   # (B, N, N)
    attn = jax.nn.softmax(energy, axis=-1)
    out = jnp.einsum('bcm,bnm->bcn', v, attn)                   # (B, C, N)
    out = out.reshape(B, C, H, W)
    return gamma[0] * out + x


if __name__ == "__main__":
    # Small shapes consistent with the module (in_dim divisible by 8).
    B, C, H, W = 2, 32, 16, 16          # N = 256
    Cq = C // 8

    key = jax.random.PRNGKey(0)
    kx, kwq, kbq, kwk, kbk, kwv, kbv, kg = jax.random.split(key, 8)

    x = jax.random.normal(kx, (B, C, H, W), dtype=jnp.float32)

    # Parameters as (in, out) matrices: torch Conv2d weight[o, i, 0, 0] == w[i, o].
    wq = jax.random.normal(kwq, (C, Cq), dtype=jnp.float32) * 0.1
    bq = jax.random.normal(kbq, (Cq,), dtype=jnp.float32) * 0.1
    wk = jax.random.normal(kwk, (C, Cq), dtype=jnp.float32) * 0.1
    bk = jax.random.normal(kbk, (Cq,), dtype=jnp.float32) * 0.1
    wv = jax.random.normal(kwv, (C, C), dtype=jnp.float32) * 0.1
    bv = jax.random.normal(kbv, (C,), dtype=jnp.float32) * 0.1
    gamma = jax.random.normal(kg, (1,), dtype=jnp.float32) * 0.02

    # Small tiles so the test exercises multiple query tiles AND multiple KV steps
    # (online-softmax rescale path); production defaults are tq=512, tk=512.
    out = self_attention_pallas(x, wq, bq, wk, bk, wv, bv, gamma, tq=128, tk=128)
    out = jax.block_until_ready(out)

    ref = _reference_jax(x, wq, bq, wk, bk, wv, bv, gamma)
    assert out.shape == (B, C, H, W)
    # bf16 matmul operands (f32 accumulation) + approx reciprocal -> relaxed tolerance.
    assert jnp.allclose(out, ref, atol=5e-3, rtol=5e-3), "mismatch vs reference"

    print("KERNEL_OK")
</pallas_src>

<mosaic_0001>
module attributes {stable_mosaic.version = 11 : i64} {
  func.func @_self_attn_kernel(%arg0: i32, %arg1: i32, %arg2: i32, %arg3: memref<1x128x32xf32, #tpu.memory_space<vmem>>, %arg4: memref<1x128x33xbf16, #tpu.memory_space<vmem>>, %arg5: memref<32x33xbf16, #tpu.memory_space<vmem>>, %arg6: memref<1x33xf32, #tpu.memory_space<vmem>>, %arg7: memref<33x32xbf16, #tpu.memory_space<vmem>>, %arg8: memref<1x32xf32, #tpu.memory_space<vmem>>, %arg9: memref<1xf32, #tpu.memory_space<smem>>, %arg10: memref<1x128x32xf32, #tpu.memory_space<vmem>>, %arg11: memref<128x33xbf16, #tpu.memory_space<vmem>>, %arg12: memref<128x1xf32, #tpu.memory_space<vmem>>, %arg13: memref<128x33xf32, #tpu.memory_space<vmem>>) attributes {dimension_semantics = [#tpu.dimension_semantics<parallel>, #tpu.dimension_semantics<parallel>, #tpu.dimension_semantics<arbitrary>], iteration_bounds = array<i64: 2, 2, 2>, scalar_prefetch = 0 : i64, scratch_operands = 3 : i64, tpu.core_type = #tpu.core_type<tc>, window_params = [{transform_indices = @transform_0, window_bounds = array<i64: 1, 128, 32>}, {transform_indices = @transform_1, window_bounds = array<i64: 1, 128, 33>}, {pipeline_mode = #tpu.pipeline_mode<synchronous>, transform_indices = @transform_2, window_bounds = array<i64: 32, 33>}, {pipeline_mode = #tpu.pipeline_mode<synchronous>, transform_indices = @transform_3, window_bounds = array<i64: 1, 33>}, {pipeline_mode = #tpu.pipeline_mode<synchronous>, transform_indices = @transform_4, window_bounds = array<i64: 33, 32>}, {pipeline_mode = #tpu.pipeline_mode<synchronous>, transform_indices = @transform_5, window_bounds = array<i64: 1, 32>}, {transform_indices = @transform_6, window_bounds = array<i64: 1>}, {transform_indices = @transform_7, window_bounds = array<i64: 1, 128, 32>}]} {
    %c0_i32 = arith.constant 0 : i32
    %0 = arith.cmpi eq, %arg2, %c0_i32 : i32
    %1 = arith.extui %0 : i1 to i32
    %c0_i32_0 = arith.constant 0 : i32
    %2 = arith.cmpi ne, %1, %c0_i32_0 : i32
    scf.if %2 {
      %c0_16 = arith.constant 0 : index
      %c0_17 = arith.constant 0 : index
      %c0_18 = arith.constant 0 : index
      %27 = vector.load %arg3[%c0_16, %c0_17, %c0_18] : memref<1x128x32xf32, #tpu.memory_space<vmem>>, vector<1x128x32xf32>
      %28 = vector.shape_cast %27 : vector<1x128x32xf32> to vector<128x32xf32>
      %29 = arith.truncf %28 : vector<128x32xf32> to vector<128x32xbf16>
      %c0_19 = arith.constant 0 : index
      %c0_20 = arith.constant 0 : index
      %30 = vector.load %arg5[%c0_19, %c0_20] : memref<32x33xbf16, #tpu.memory_space<vmem>>, vector<32x33xbf16>
      %cst_21 = arith.constant dense<0.000000e+00> : vector<128x33xf32>
      %31 = tpu.matmul %29, %30, %cst_21 {dimension_numbers = #tpu.dot_dimension_numbers<[1], [0], [0], [1], [0, 0, 1, 1], [], []>} : vector<128x32xbf16>, vector<32x33xbf16>, vector<128x33xf32> -> vector<128x33xf32>
      %c0_22 = arith.constant 0 : index
      %c0_23 = arith.constant 0 : index
      %32 = vector.load %arg6[%c0_22, %c0_23] : memref<1x33xf32, #tpu.memory_space<vmem>>, vector<1x33xf32>
      %33 = vector.broadcast %32 : vector<1x33xf32> to vector<128x33xf32>
      %34 = arith.addf %31, %33 : vector<128x33xf32>
      %35 = arith.truncf %34 : vector<128x33xf32> to vector<128x33xbf16>
      %c0_24 = arith.constant 0 : index
      %c0_25 = arith.constant 0 : index
      %36 = vector.load %arg11[%c0_24, %c0_25] : memref<128x33xbf16, #tpu.memory_space<vmem>>, vector<128x33xbf16>
      tpu.vector_store %arg11[%c0_24, %c0_25], %35 {strides = array<i32>} : memref<128x33xbf16, #tpu.memory_space<vmem>>, vector<128x33xbf16>,
      %cst_26 = arith.constant 0xFF800000 : f32
      %37 = vector.broadcast %cst_26 : f32 to vector<128x1xf32>
      %c0_27 = arith.constant 0 : index
      %c0_28 = arith.constant 0 : index
      %38 = vector.load %arg12[%c0_27, %c0_28] : memref<128x1xf32, #tpu.memory_space<vmem>>, vector<128x1xf32>
      tpu.vector_store %arg12[%c0_27, %c0_28], %37 {strides = array<i32>} : memref<128x1xf32, #tpu.memory_space<vmem>>, vector<128x1xf32>,
      %cst_29 = arith.constant 0.000000e+00 : f32
      %39 = vector.broadcast %cst_29 : f32 to vector<128x33xf32>
      %c0_30 = arith.constant 0 : index
      %c0_31 = arith.constant 0 : index
      %40 = vector.load %arg13[%c0_30, %c0_31] : memref<128x33xf32, #tpu.memory_space<vmem>>, vector<128x33xf32>
      tpu.vector_store %arg13[%c0_30, %c0_31], %39 {strides = array<i32>} : memref<128x33xf32, #tpu.memory_space<vmem>>, vector<128x33xf32>,
    } else {
    }
    %c0 = arith.constant 0 : index
    %c0_1 = arith.constant 0 : index
    %c0_2 = arith.constant 0 : index
    %3 = vector.load %arg4[%c0, %c0_1, %c0_2] : memref<1x128x33xbf16, #tpu.memory_space<vmem>>, vector<1x128x33xbf16>
    %4 = vector.shape_cast %3 : vector<1x128x33xbf16> to vector<128x33xbf16>
    %c0_3 = arith.constant 0 : index
    %c0_4 = arith.constant 0 : index
    %5 = vector.load %arg11[%c0_3, %c0_4] : memref<128x33xbf16, #tpu.memory_space<vmem>>, vector<128x33xbf16>
    %cst = arith.constant dense<0.000000e+00> : vector<128x128xf32>
    %6 = tpu.matmul %5, %4, %cst {dimension_numbers = #tpu.dot_dimension_numbers<[1], [1], [0], [0], [0, 0, 1, 0], [], []>} : vector<128x33xbf16>, vector<128x33xbf16>, vector<128x128xf32> -> vector<128x128xf32>
    %c0_5 = arith.constant 0 : index
    %c0_6 = arith.constant 0 : index
    %7 = vector.load %arg12[%c0_5, %c0_6] : memref<128x1xf32, #tpu.memory_space<vmem>>, vector<128x1xf32>
    %cst_7 = arith.constant dense<0xFF800000> : vector<128xf32>
    %8 = vector.multi_reduction <maximumf>, %6, %cst_7 [1] : vector<128x128xf32> to vector<128xf32>
    %9 = vector.shape_cast %8 : vector<128xf32> to vector<128x1xf32>
    %10 = arith.maximumf %7, %9 : vector<128x1xf32>
    %11 = arith.subf %7, %10 : vector<128x1xf32>
    %12 = math.exp %11 : vector<128x1xf32>
    %13 = vector.broadcast %10 : vector<128x1xf32> to vector<128x128xf32>
    %14 = arith.subf %6, %13 : vector<128x128xf32>
    %15 = math.exp %14 : vector<128x128xf32>
    %16 = arith.truncf %15 : vector<128x128xf32> to vector<128x128xbf16>
    %c0_8 = arith.constant 0 : index
    %c0_9 = arith.constant 0 : index
    %17 = vector.load %arg13[%c0_8, %c0_9] : memref<128x33xf32, #tpu.memory_space<vmem>>, vector<128x33xf32>
    %18 = vector.broadcast %12 : vector<128x1xf32> to vector<128x33xf32>
    %19 = arith.mulf %18, %17 : vector<128x33xf32>
    %cst_10 = arith.constant dense<0.000000e+00> : vector<128x33xf32>
    %20 = tpu.matmul %16, %4, %cst_10 {dimension_numbers = #tpu.dot_dimension_numbers<[1], [0], [0], [1], [0, 0, 1, 1], [], []>} : vector<128x128xbf16>, vector<128x33xbf16>, vector<128x33xf32> -> vector<128x33xf32>
    %21 = arith.addf %19, %20 : vector<128x33xf32>
    %c0_11 = arith.constant 0 : index
    %c0_12 = arith.constant 0 : index
    %22 = vector.load %arg13[%c0_11, %c0_12] : memref<128x33xf32, #tpu.memory_space<vmem>>, vector<128x33xf32>
    tpu.vector_store %arg13[%c0_11, %c0_12], %21 {strides = array<i32>} : memref<128x33xf32, #tpu.memory_space<vmem>>, vector<128x33xf32>,
    %c0_13 = arith.constant 0 : index
    %c0_14 = arith.constant 0 : index
    %23 = vector.load %arg12[%c0_13, %c0_14] : memref<128x1xf32, #tpu.memory_space<vmem>>, vector<128x1xf32>
    tpu.vector_store %arg12[%c0_13, %c0_14], %10 {strides = array<i32>} : memref<128x1xf32, #tpu.memory_space<vmem>>, vector<128x1xf32>,
    %c1_i32 = arith.constant 1 : i32
    %24 = arith.cmpi eq, %arg2, %c1_i32 : i32
    %25 = arith.extui %24 : i1 to i32
    %c0_i32_15 = arith.constant 0 : i32
    %26 = arith.cmpi ne, %25, %c0_i32_15 : i32
    scf.if %26 {
      %c0_16 = arith.constant 0 : index
      %c0_17 = arith.constant 0 : index
      %27 = vector.load %arg13[%c0_16, %c0_17] : memref<128x33xf32, #tpu.memory_space<vmem>>, vector<128x33xf32>
      %28 = vector.extract_strided_slice %27 {offsets = [0, 32], sizes = [128, 1], strides = [1, 1]} : vector<128x33xf32> to vector<128x1xf32>
      %29 = tpu.reciprocal %28 {approx = true} : vector<128x1xf32> -> vector<128x1xf32>
      %30 = vector.broadcast %29 : vector<128x1xf32> to vector<128x33xf32>
      %31 = arith.mulf %27, %30 : vector<128x33xf32>
      %32 = arith.truncf %31 : vector<128x33xf32> to vector<128x33xbf16>
      %c0_18 = arith.constant 0 : index
      %c0_19 = arith.constant 0 : index
      %33 = vector.load %arg7[%c0_18, %c0_19] : memref<33x32xbf16, #tpu.memory_space<vmem>>, vector<33x32xbf16>
      %cst_20 = arith.constant dense<0.000000e+00> : vector<128x32xf32>
      %34 = tpu.matmul %32, %33, %cst_20 {dimension_numbers = #tpu.dot_dimension_numbers<[1], [0], [0], [1], [0, 0, 1, 1], [], []>} : vector<128x33xbf16>, vector<33x32xbf16>, vector<128x32xf32> -> vector<128x32xf32>
      %c0_21 = arith.constant 0 : index
      %c0_22 = arith.constant 0 : index
      %35 = vector.load %arg8[%c0_21, %c0_22] : memref<1x32xf32, #tpu.memory_space<vmem>>, vector<1x32xf32>
      %36 = vector.broadcast %35 : vector<1x32xf32> to vector<128x32xf32>
      %37 = arith.addf %34, %36 : vector<128x32xf32>
      %c0_23 = arith.constant 0 : index
      %38 = memref.load %arg9[%c0_23] : memref<1xf32, #tpu.memory_space<smem>>
      %39 = vector.broadcast %38 : f32 to vector<128x32xf32>
      %40 = arith.mulf %39, %37 : vector<128x32xf32>
      %c0_24 = arith.constant 0 : index
      %c0_25 = arith.constant 0 : index
      %c0_26 = arith.constant 0 : index
      %41 = vector.load %arg3[%c0_24, %c0_25, %c0_26] : memref<1x128x32xf32, #tpu.memory_space<vmem>>, vector<1x128x32xf32>
      %42 = vector.shape_cast %41 : vector<1x128x32xf32> to vector<128x32xf32>
      %43 = arith.addf %40, %42 : vector<128x32xf32>
      %c0_27 = arith.constant 0 : index
      %c0_28 = arith.constant 0 : index
      %c0_29 = arith.constant 0 : index
      %44 = vector.load %arg10[%c0_27, %c0_28, %c0_29] : memref<1x128x32xf32, #tpu.memory_space<vmem>>, vector<1x128x32xf32>
      %45 = vector.shape_cast %44 : vector<1x128x32xf32> to vector<128x32xf32>
      %46 = vector.shape_cast %43 : vector<128x32xf32> to vector<1x128x32xf32>
      tpu.vector_store %arg10[%c0_27, %c0_28, %c0_29], %46 {strides = array<i32>} : memref<1x128x32xf32, #tpu.memory_space<vmem>>, vector<1x128x32xf32>,
    } else {
    }
    return
  }
  func.func @transform_0(%arg0: i32, %arg1: i32, %arg2: i32) -> (i32, i32, i32) {
    %c0_i32 = arith.constant 0 : i32
    %c0_i32_0 = arith.constant 0 : i32
    return %arg0, %arg1, %c0_i32 : i32, i32, i32
  }
  func.func @transform_1(%arg0: i32, %arg1: i32, %arg2: i32) -> (i32, i32, i32) {
    %c0_i32 = arith.constant 0 : i32
    %c0_i32_0 = arith.constant 0 : i32
    return %arg0, %arg2, %c0_i32 : i32, i32, i32
  }
  func.func @transform_2(%arg0: i32, %arg1: i32, %arg2: i32) -> (i32, i32) {
    %c0_i32 = arith.constant 0 : i32
    %c0_i32_0 = arith.constant 0 : i32
    %c0_i32_1 = arith.constant 0 : i32
    return %c0_i32, %c0_i32_0 : i32, i32
  }
  func.func @transform_3(%arg0: i32, %arg1: i32, %arg2: i32) -> (i32, i32) {
    %c0_i32 = arith.constant 0 : i32
    %c0_i32_0 = arith.constant 0 : i32
    %c0_i32_1 = arith.constant 0 : i32
    return %c0_i32, %c0_i32_0 : i32, i32
  }
  func.func @transform_4(%arg0: i32, %arg1: i32, %arg2: i32) -> (i32, i32) {
    %c0_i32 = arith.constant 0 : i32
    %c0_i32_0 = arith.constant 0 : i32
    %c0_i32_1 = arith.constant 0 : i32
    return %c0_i32, %c0_i32_0 : i32, i32
  }
  func.func @transform_5(%arg0: i32, %arg1: i32, %arg2: i32) -> (i32, i32) {
    %c0_i32 = arith.constant 0 : i32
    %c0_i32_0 = arith.constant 0 : i32
    %c0_i32_1 = arith.constant 0 : i32
    return %c0_i32, %c0_i32_0 : i32, i32
  }
  func.func @transform_6(%arg0: i32, %arg1: i32, %arg2: i32) -> i32 {
    %c0_i32 = arith.constant 0 : i32
    %c0_i32_0 = arith.constant 0 : i32
    return %c0_i32 : i32
  }
  func.func @transform_7(%arg0: i32, %arg1: i32, %arg2: i32) -> (i32, i32, i32) {
    %c0_i32 = arith.constant 0 : i32
    %c0_i32_0 = arith.constant 0 : i32
    return %arg0, %arg1, %c0_i32 : i32, i32, i32
  }
}

</mosaic_0001>

<llo_original>
// kernel: tpu_custom_call.1
$region0: #{tpu_custom_call.1}
  #allocation0 [shape = 'u32[]', space=smem, size = 0x4, offset = 0x4, fixed_abs, tag = 'smem constant byte address 0x4 - core index']
  #allocation1 [shape = 'u32[72,128]{1,0:T(1,128)}', space=vmem, size = 0x9000, scoped, tag = 'internal scratch']
  #allocation2 [shape = 'bf16[128,33]{1,0:T(8,128)(2,1)}', space=vmem, size = 0x8000, scoped, tag = 'scratch operand']
  #allocation3 [shape = 'f32[128,1]{1,0:T(8,128)}', space=vmem, size = 0x10000, scoped, tag = 'scratch operand']
  #allocation4 [shape = 'f32[128,33]{1,0:T(8,128)}', space=vmem, size = 0x10000, scoped, tag = 'scratch operand']
  #allocation5 [shape = 'f32[1]{0:T(128)S(6)}', space=smem, size = 0x200, scoped, tag = 'scoped memory for tpu_custom_call.1']
  %s0 = inlined_call_operand.vmem [shape: f32[2,256,32], index: 0, kind: input, shape index: {}]
  %s1 = inlined_call_operand.vmem [shape: bf16[2,256,33], index: 1, kind: input, shape index: {}]
  %s2 = inlined_call_operand.vmem [shape: bf16[32,33], index: 2, kind: input, shape index: {}]
  %s3 = inlined_call_operand.vmem [shape: f32[1,33], index: 3, kind: input, shape index: {}]
  %s4 = inlined_call_operand.vmem [shape: bf16[33,32], index: 4, kind: input, shape index: {}]
  %s5 = inlined_call_operand.vmem [shape: f32[1,32], index: 5, kind: input, shape index: {}]
  %s6 = inlined_call_operand.<no memory space> [shape: f32[1], index: 6, kind: input, shape index: {}]
  %s7 = inlined_call_operand.vmem [shape: f32[2,256,32], index: 7, kind: output, shape index: {}]
  %s8 = sld [smem:[#allocation0]]
  $region69: #{tpu_custom_call.1} parent=0
    _
  %s10 = ssub.s32 1, %s8
  %s11 = scalar_select 0, %s10, %s8
  %12 = sst [smem:[#allocation5]] %s6
  loop: start=0, step=1, limit=10
  $region2: #{tpu_custom_call.1} parent=0 // loop_pre_header
    _
  $region3: #{tpu_custom_call.1} parent=0 // loop_header
    %s14 = sphi 0, %s18
    %p15 = scmp.ge.s32.totalorder %s14, 10
    %s21 = sphi 0, %s40
    %s22 = sphi 0, %s36
    %s23 = sphi 0, %s32
    %s24 = sphi 0, %s21
    %s25 = sphi 0, %s22
    %s26 = sphi 0, %s23
    %s27 = sphi 0, %s24
    %s28 = sphi 0, %s25
    %s29 = sphi 0, %s26
    %s45 = sphi 0, %s47
    %s48 = sphi 0, %s45
    %s49 = sphi 0, %s48
    %s65 = sphi 0, %s49
    %s73 = sphi 0, %s75
    %s76 = sphi 0, %s73
    %s77 = sphi 0, %s76
    %s93 = sphi 0, %s77
    %s97 = sphi 0, %s97
    %s99 = sphi 0, %s97
    %s100 = sphi 0, %s99
    %s114 = sphi 0, %s100
    %s118 = sphi 0, %s118
    %s120 = sphi 0, %s118
    %s121 = sphi 0, %s120
    %s135 = sphi 0, %s121
    %s139 = sphi 0, %s139
    %s141 = sphi 0, %s139
    %s142 = sphi 0, %s141
    %s156 = sphi 0, %s142
    %s160 = sphi 0, %s160
    %s162 = sphi 0, %s160
    %s163 = sphi 0, %s162
    %s177 = sphi 0, %s163
    %s181 = sphi 0, %s181
    %s183 = sphi 0, %s181
    %s184 = sphi 0, %s183
    %s198 = sphi 0, %s184
    %s206 = sphi 0, %s208
    %s209 = sphi 0, %s206
    %s210 = sphi 0, %s209
    %s226 = sphi 0, %s210
  $region4: #{tpu_custom_call.1} parent=0 // loop_header_branch
    %17 = sbr.rel (%p15) target = $region8
  $region5: #{tpu_custom_call.1} parent=0 // loop_body
    %s19 = ssub.s32 %s14, 1
    %s20 = ssub.s32 %s14, 2
    %s30 = sadd.s32 1, %s23
    %p31 = scmp.ge.s32.totalorder %s30, 2
    %s32 = scalar_select %p31, 0, %s30
    %s33 = sadd.s32 1, %s22
    %s34 = scalar_select %p31, %s33, %s22
    %p35 = scmp.ge.s32.totalorder %s34, 2
    %s36 = scalar_select %p35, 0, %s34
    %s37 = sadd.s32 1, %s21
    %s38 = scalar_select %p35, %s37, %s21
    %p39 = scmp.ge.s32.totalorder %s38, 2
    %s40 = scalar_select %p39, 0, %s38
    %s41 = ssub.s32 %s21, %s40
    %s42 = ssub.s32 %s22, %s36
    %s43 = sor.u32 %s41, %s42
    %p44 = scmp.eq.s32.totalorder %s43, 0
    %s46 = sadd.s32 %s45, 1
    %s47 = scalar_select %p44, %s45, %s46
    %p50 = pneg %p44
    %p51 = scmp.eq.s32.totalorder %s14, 7
    %p52 = por %p50, %p51
    %p53 = scmp.ne.s32.totalorder %s45, %s48
    %p54 = scmp.eq.s32.totalorder %s14, 0
    %p55 = por %p53, %p54
    %p56 = scmp.ne.s32.totalorder %s45, %s48
    %p57 = scmp.eq.s32.totalorder %s19, 7
    %p58 = por %p56, %p57
    %p59 = scmp.ne.s32.totalorder %s48, %s49
    %p60 = scmp.eq.s32.totalorder %s19, 0
    %p61 = por %p59, %p60
    %p62 = scmp.ne.s32.totalorder %s48, %s49
    %p63 = scmp.eq.s32.totalorder %s20, 7
    %p64 = por %p62, %p63
    %p66 = scmp.ne.s32.totalorder %s49, %s65
    %p67 = scmp.eq.s32.totalorder %s20, 0
    %p68 = por %p66, %p67
    %s69 = ssub.s32 %s21, %s40
    %s70 = ssub.s32 %s23, %s32
    %s71 = sor.u32 %s69, %s70
    %p72 = scmp.eq.s32.totalorder %s71, 0
    %s74 = sadd.s32 %s73, 1
    %s75 = scalar_select %p72, %s73, %s74
    %p78 = pneg %p72
    %p79 = scmp.eq.s32.totalorder %s14, 7
    %p80 = por %p78, %p79
    %p81 = scmp.ne.s32.totalorder %s73, %s76
    %p82 = scmp.eq.s32.totalorder %s14, 0
    %p83 = por %p81, %p82
    %p84 = scmp.ne.s32.totalorder %s73, %s76
    %p85 = scmp.eq.s32.totalorder %s19, 7
    %p86 = por %p84, %p85
    %p87 = scmp.ne.s32.totalorder %s76, %s77
    %p88 = scmp.eq.s32.totalorder %s19, 0
    %p89 = por %p87, %p88
    %p90 = scmp.ne.s32.totalorder %s76, %s77
    %p91 = scmp.eq.s32.totalorder %s20, 7
    %p92 = por %p90, %p91
    %p94 = scmp.ne.s32.totalorder %s77, %s93
    %p95 = scmp.eq.s32.totalorder %s20, 0
    %p96 = por %p94, %p95
    %s98 = sadd.s32 %s97, 1
    %p101 = scmp.eq.s32.totalorder %s14, 7
    %p102 = scmp.ne.s32.totalorder %s97, %s99
    %p103 = scmp.eq.s32.totalorder %s14, 0
    %p104 = por %p102, %p103
    %p105 = scmp.ne.s32.totalorder %s97, %s99
    %p106 = scmp.eq.s32.totalorder %s19, 7
    %p107 = por %p105, %p106
    %p108 = scmp.ne.s32.totalorder %s99, %s100
    %p109 = scmp.eq.s32.totalorder %s19, 0
    %p110 = por %p108, %p109
    %p111 = scmp.ne.s32.totalorder %s99, %s100
    %p112 = scmp.eq.s32.totalorder %s20, 7
    %p113 = por %p111, %p112
    %p115 = scmp.ne.s32.totalorder %s100, %s114
    %p116 = scmp.eq.s32.totalorder %s20, 0
    %p117 = por %p115, %p116
    %s119 = sadd.s32 %s118, 1
    %p122 = scmp.eq.s32.totalorder %s14, 7
    %p123 = scmp.ne.s32.totalorder %s118, %s120
    %p124 = scmp.eq.s32.totalorder %s14, 0
    %p125 = por %p123, %p124
    %p126 = scmp.ne.s32.totalorder %s118, %s120
    %p127 = scmp.eq.s32.totalorder %s19, 7
    %p128 = por %p126, %p127
    %p129 = scmp.ne.s32.totalorder %s120, %s121
    %p130 = scmp.eq.s32.totalorder %s19, 0
    %p131 = por %p129, %p130
    %p132 = scmp.ne.s32.totalorder %s120, %s121
    %p133 = scmp.eq.s32.totalorder %s20, 7
    %p134 = por %p132, %p133
    %p136 = scmp.ne.s32.totalorder %s121, %s135
    %p137 = scmp.eq.s32.totalorder %s20, 0
    %p138 = por %p136, %p137
    %s140 = sadd.s32 %s139, 1
    %p143 = scmp.eq.s32.totalorder %s14, 7
    %p144 = scmp.ne.s32.totalorder %s139, %s141
    %p145 = scmp.eq.s32.totalorder %s14, 0
    %p146 = por %p144, %p145
    %p147 = scmp.ne.s32.totalorder %s139, %s141
    %p148 = scmp.eq.s32.totalorder %s19, 7
    %p149 = por %p147, %p148
    %p150 = scmp.ne.s32.totalorder %s141, %s142
    %p151 = scmp.eq.s32.totalorder %s19, 0
    %p152 = por %p150, %p151
    %p153 = scmp.ne.s32.totalorder %s141, %s142
    %p154 = scmp.eq.s32.totalorder %s20, 7
    %p155 = por %p153, %p154
    %p157 = scmp.ne.s32.totalorder %s142, %s156
    %p158 = scmp.eq.s32.totalorder %s20, 0
    %p159 = por %p157, %p158
    %s161 = sadd.s32 %s160, 1
    %p164 = scmp.eq.s32.totalorder %s14, 7
    %p165 = scmp.ne.s32.totalorder %s160, %s162
    %p166 = scmp.eq.s32.totalorder %s14, 0
    %p167 = por %p165, %p166
    %p168 = scmp.ne.s32.totalorder %s160, %s162
    %p169 = scmp.eq.s32.totalorder %s19, 7
    %p170 = por %p168, %p169
    %p171 = scmp.ne.s32.totalorder %s162, %s163
    %p172 = scmp.eq.s32.totalorder %s19, 0
    %p173 = por %p171, %p172
    %p174 = scmp.ne.s32.totalorder %s162, %s163
    %p175 = scmp.eq.s32.totalorder %s20, 7
    %p176 = por %p174, %p175
    %p178 = scmp.ne.s32.totalorder %s163, %s177
    %p179 = scmp.eq.s32.totalorder %s20, 0
    %p180 = por %p178, %p179
    %s182 = sadd.s32 %s181, 1
    %p185 = scmp.eq.s32.totalorder %s14, 7
    %p186 = scmp.ne.s32.totalorder %s181, %s183
    %p187 = scmp.eq.s32.totalorder %s14, 0
    %p188 = por %p186, %p187
    %p189 = scmp.ne.s32.totalorder %s181, %s183
    %p190 = scmp.eq.s32.totalorder %s19, 7
    %p191 = por %p189, %p190
    %p192 = scmp.ne.s32.totalorder %s183, %s184
    %p193 = scmp.eq.s32.totalorder %s19, 0
    %p194 = por %p192, %p193
    %p195 = scmp.ne.s32.totalorder %s183, %s184
    %p196 = scmp.eq.s32.totalorder %s20, 7
    %p197 = por %p195, %p196
    %p199 = scmp.ne.s32.totalorder %s184, %s198
    %p200 = scmp.eq.s32.totalorder %s20, 0
    %p201 = por %p199, %p200
    %s202 = ssub.s32 %s21, %s40
    %s203 = ssub.s32 %s22, %s36
    %s204 = sor.u32 %s202, %s203
    %p205 = scmp.eq.s32.totalorder %s204, 0
    %s207 = sadd.s32 %s206, 1
    %s208 = scalar_select %p205, %s206, %s207
    %p211 = pneg %p205
    %p212 = scmp.eq.s32.totalorder %s14, 7
    %p213 = por %p211, %p212
    %p214 = scmp.ne.s32.totalorder %s206, %s209
    %p215 = scmp.eq.s32.totalorder %s14, 0
    %p216 = por %p214, %p215
    %p217 = scmp.ne.s32.totalorder %s206, %s209
    %p218 = scmp.eq.s32.totalorder %s19, 7
    %p219 = por %p217, %p218
    %p220 = scmp.ne.s32.totalorder %s209, %s210
    %p221 = scmp.eq.s32.totalorder %s19, 0
    %p222 = por %p220, %p221
    %p223 = scmp.ne.s32.totalorder %s209, %s210
    %p224 = scmp.eq.s32.totalorder %s20, 7
    %p225 = por %p223, %p224
    %p227 = scmp.ne.s32.totalorder %s210, %s226
    %p228 = scmp.eq.s32.totalorder %s20, 0
    %p229 = por %p227, %p228
    %p230 = scmp.le.s32.totalorder 1, %s14
    %p231 = scmp.lt.s32.totalorder %s14, 9
    %p232 = pnand %p230, %p231
    %p233 = pneg %p232
    // Predicated region
    $region9: #{tpu_custom_call.1} parent=5 // pred_check
      _
    $region10: #{tpu_custom_call.1} parent=5 // pred_check_branch
      %235 = sbr.rel (%p232) target = $region12
    $region11: #{tpu_custom_call.1} parent=5 // pred_region
      %s236 = ssub.s32 %s14, 1
      // Predicated region
      $region13: #{tpu_custom_call.1} parent=11 // pred_check
        %p237 = pneg %p110
      $region14: #{tpu_custom_call.1} parent=11 // pred_check_branch
        %239 = sbr.rel (%p237) target = $region16
      $region15: #{tpu_custom_call.1} parent=11 // pred_region
        _
      $region16: #{tpu_custom_call.1} parent=11 // pred_fallthru
        _
      // Predicated region
      $region17: #{tpu_custom_call.1} parent=11 // pred_check
        %p240 = pneg %p131
      $region18: #{tpu_custom_call.1} parent=11 // pred_check_branch
        %242 = sbr.rel (%p240) target = $region20
      $region19: #{tpu_custom_call.1} parent=11 // pred_region
        _
      $region20: #{tpu_custom_call.1} parent=11 // pred_fallthru
        _
      // Predicated region
      $region21: #{tpu_custom_call.1} parent=11 // pred_check
        %p243 = pneg %p152
      $region22: #{tpu_custom_call.1} parent=11 // pred_check_branch
        %245 = sbr.rel (%p243) target = $region24
      $region23: #{tpu_custom_call.1} parent=11 // pred_region
        _
      $region24: #{tpu_custom_call.1} parent=11 // pred_fallthru
        _
      // Predicated region
      $region25: #{tpu_custom_call.1} parent=11 // pred_check
        %p246 = pneg %p173
      $region26: #{tpu_custom_call.1} parent=11 // pred_check_branch
        %248 = sbr.rel (%p246) target = $region28
      $region27: #{tpu_custom_call.1} parent=11 // pred_region
        _
      $region28: #{tpu_custom_call.1} parent=11 // pred_fallthru
        _
      // Predicated region
      $region29: #{tpu_custom_call.1} parent=11 // pred_check
        %p249 = pneg %p194
      $region30: #{tpu_custom_call.1} parent=11 // pred_check_branch
        %251 = sbr.rel (%p249) target = $region32
      $region31: #{tpu_custom_call.1} parent=11 // pred_region
        _
      $region32: #{tpu_custom_call.1} parent=11 // pred_fallthru
        _
    $region12: #{tpu_custom_call.1} parent=5 // pred_fallthru
      _
    %p252 = scmp.lt.s32.totalorder %s14, 8
    // Predicated region
    $region33: #{tpu_custom_call.1} parent=5 // pred_check
      %p253 = pneg %p252
    $region34: #{tpu_custom_call.1} parent=5 // pred_check_branch
      %255 = sbr.rel (%p253) target = $region36
    $region35: #{tpu_custom_call.1} parent=5 // pred_region
      // Predicated region
      $region37: #{tpu_custom_call.1} parent=35 // pred_check
        %p256 = pneg %p55
      $region38: #{tpu_custom_call.1} parent=35 // pred_check_branch
        %258 = sbr.rel (%p256) target = $region40
      $region39: #{tpu_custom_call.1} parent=35 // pred_region
        %s259 = smul.u32 16, %s22
        %p260 = scmp.lt.s32.totalorder %s21, 1
        %s261 = scalar_select %p260, %s21, 1
        %p262 = scmp.lt.s32.totalorder %s259, 31
        %s263 = scalar_select %p262, %s259, 31
        %s264 = smul.addr %s261, 32
        %s265 = sadd.s32 %s263, %s264
        %s266 = smul.addr %s265, 8
        %s267 = scalar_lea.vmem %s0, %s266
        %s268 = smul.u32 16, %s22
      $region40: #{tpu_custom_call.1} parent=35 // pred_fallthru
        _
      // Predicated region
      $region41: #{tpu_custom_call.1} parent=35 // pred_check
        %p269 = pneg %p83
      $region42: #{tpu_custom_call.1} parent=35 // pred_check_branch
        %271 = sbr.rel (%p269) target = $region44
      $region43: #{tpu_custom_call.1} parent=35 // pred_region
        %s272 = smul.u32 16, %s23
        %p273 = scmp.lt.s32.totalorder %s21, 1
        %s274 = scalar_select %p273, %s21, 1
        %p275 = scmp.lt.s32.totalorder %s272, 31
        %s276 = scalar_select %p275, %s272, 31
        %s277 = smul.addr %s274, 32
        %s278 = sadd.s32 %s276, %s277
        %s279 = smul.addr %s278, 4
        %s280 = scalar_lea.vmem %s1, %s279
        %s281 = smul.u32 16, %s23
      $region44: #{tpu_custom_call.1} parent=35 // pred_fallthru
        _
    $region36: #{tpu_custom_call.1} parent=5 // pred_fallthru
      _
    %p282 = scmp.le.s32.totalorder 1, %s14
    %p283 = scmp.lt.s32.totalorder %s14, 9
    %p284 = pnand %p282, %p283
    %p285 = pneg %p284
    // Predicated region
    $region45: #{tpu_custom_call.1} parent=5 // pred_check
      _
    $region46: #{tpu_custom_call.1} parent=5 // pred_check_branch
      %287 = sbr.rel (%p284) target = $region48
    $region47: #{tpu_custom_call.1} parent=5 // pred_region
      %s288 = ssub.s32 %s14, 1
      %s289 = smul.u32 16, %s25
      %p290 = scmp.lt.s32.totalorder %s24, 1
      %s291 = scalar_select %p290, %s24, 1
      %p292 = scmp.lt.s32.totalorder %s289, 31
      %s293 = scalar_select %p292, %s289, 31
      %s294 = smul.addr %s291, 32
      %s295 = sadd.s32 %s293, %s294
      %s296 = smul.addr %s295, 8
      %s297 = scalar_lea.vmem %s0, %s296
      %p298 = pneg %p61
      %p299 = pneg %p58
      %s300 = smul.u32 16, %s26
      %p301 = scmp.lt.s32.totalorder %s24, 1
      %s302 = scalar_select %p301, %s24, 1
      %p303 = scmp.lt.s32.totalorder %s300, 31
      %s304 = scalar_select %p303, %s300, 31
      %s305 = smul.addr %s302, 32
      %s306 = sadd.s32 %s304, %s305
      %s307 = smul.addr %s306, 4
      %s308 = scalar_lea.vmem %s1, %s307
      %p309 = pneg %p89
      %p310 = pneg %p86
      %p311 = pneg %p110
      %p312 = pneg %p107
      %p313 = pneg %p131
      %p314 = pneg %p128
      %p315 = pneg %p152
      %p316 = pneg %p149
      %p317 = pneg %p173
      %p318 = pneg %p170
      %p319 = pneg %p194
      %p320 = pneg %p191
      %p321 = pneg %p222
      %p322 = pneg %p219
      %s323 = smul.u32 16, %s25
      %p324 = scmp.lt.s32.totalorder %s24, 1
      %s325 = scalar_select %p324, %s24, 1
      %p326 = scmp.lt.s32.totalorder %s323, 31
      %s327 = scalar_select %p326, %s323, 31
      %s328 = smul.addr %s325, 32
      %s329 = sadd.s32 %s327, %s328
      %s330 = smul.addr %s329, 8
      %s331 = scalar_lea.vmem %s7, %s330
      %s332 = smul.u32 16, %s25
      %p333 = scmp.lt.s32.totalorder %s24, 1
      %s334 = scalar_select %p333, %s24, 1
      %p335 = scmp.lt.s32.totalorder %s332, 31
      %s336 = scalar_select %p335, %s332, 31
      %s337 = smul.addr %s334, 32
      %s338 = sadd.s32 %s336, %s337
      %s339 = smul.addr %s338, 8
      %s340 = scalar_lea.vmem %s0, %s339
      %s341 = smul.u32 16, %s25
      %s342 = smul.u32 16, %s26
      %p343 = scmp.lt.s32.totalorder %s24, 1
      %s344 = scalar_select %p343, %s24, 1
      %p345 = scmp.lt.s32.totalorder %s342, 31
      %s346 = scalar_select %p345, %s342, 31
      %s347 = smul.addr %s344, 32
      %s348 = sadd.s32 %s346, %s347
      %s349 = smul.addr %s348, 4
      %s350 = scalar_lea.vmem %s1, %s349
      %s351 = smul.u32 16, %s26
      %s352 = smul.u32 16, %s25
      %p353 = scmp.lt.s32.totalorder %s24, 1
      %s354 = scalar_select %p353, %s24, 1
      %p355 = scmp.lt.s32.totalorder %s352, 31
      %s356 = scalar_select %p355, %s352, 31
      %s357 = smul.addr %s354, 32
      %s358 = sadd.s32 %s356, %s357
      %s359 = smul.addr %s358, 8
      %s360 = scalar_lea.vmem %s7, %s359
      %s361 = smul.u32 16, %s25
      %p363 = scmp.eq.s32.totalorder %s26, 0
      // Predicated region
      $region49: #{tpu_custom_call.1} parent=47 // pred_check
        %p364 = pneg %p363
      $region50: #{tpu_custom_call.1} parent=47 // pred_check_branch
        %366 = sbr.rel (%p364) target = $region52
      $region51: #{tpu_custom_call.1} parent=47 // pred_region
        %v367 = vld [vmem:[%s340] sm:$0xff]
        %v368 = vld [vmem:[%s340 + $0x8] sm:$0xff]
        %v369 = vld [vmem:[%s340 + $0x10] sm:$0xff]
        %v370 = vld [vmem:[%s340 + $0x18] sm:$0xff]
        %v371 = vld [vmem:[%s340 + $0x20] sm:$0xff]
        %v372 = vld [vmem:[%s340 + $0x28] sm:$0xff]
        %v373 = vld [vmem:[%s340 + $0x30] sm:$0xff]
        %v374 = vld [vmem:[%s340 + $0x38] sm:$0xff]
        %v375 = vld [vmem:[%s340 + $0x40] sm:$0xff]
        %v376 = vld [vmem:[%s340 + $0x48] sm:$0xff]
        %v377 = vld [vmem:[%s340 + $0x50] sm:$0xff]
        %v378 = vld [vmem:[%s340 + $0x58] sm:$0xff]
        %v379 = vld [vmem:[%s340 + $0x60] sm:$0xff]
        %v380 = vld [vmem:[%s340 + $0x68] sm:$0xff]
        %v381 = vld [vmem:[%s340 + $0x70] sm:$0xff]
        %v382 = vld [vmem:[%s340 + $0x78] sm:$0xff]
        %v383 = vpack.c.bf16 %v368, %v367
        %v384 = vpack.c.bf16 %v370, %v369
        %v385 = vpack.c.bf16 %v372, %v371
        %v386 = vpack.c.bf16 %v374, %v373
        %v387 = vpack.c.bf16 %v376, %v375
        %v388 = vpack.c.bf16 %v378, %v377
        %v389 = vpack.c.bf16 %v380, %v379
        %v390 = vpack.c.bf16 %v382, %v381
        %v391 = vld [vmem:[%s2] sm:$0xf]
        %v392 = vld [vmem:[%s2 + $0x4] sm:$0xf]
        %v393 = vld [vmem:[%s2 + $0x8] sm:$0xf]
        %v394 = vld [vmem:[%s2 + $0xc] sm:$0xf]
        %v395 = vld [vmem:[%s3] sm:$0x1]
        %v397 = vperm.slane %v395, 0
        %v403 = vunpack.c.l.b16 %v391
        %v404 = vunpack.c.l.b16 %v392
        %v405 = vunpack.c.l.b16 %v393
        %v406 = vunpack.c.l.b16 %v394
        %v407 = vpack.c.b16 %v404, %v403
        %v408 = vpack.c.b16 %v406, %v405
        %vm411 = vcmask 261120
        %v413 = vsel %vm411, %v383, 0
        %v416 = vsel %vm411, %v384, 0
        %v419 = vsel %vm411, %v385, 0
        %v422 = vsel %vm411, %v386, 0
        %v425 = vsel %vm411, %v387, 0
        %v428 = vsel %vm411, %v388, 0
        %v431 = vsel %vm411, %v389, 0
        %v434 = vsel %vm411, %v390, 0
        %436 = vmatpush.bf16.msra.mxu0 0
        %437 = vmatpush.bf16.msra.mxu0 0
        %438 = vmatpush.bf16.msra.mxu0 0
        %439 = vmatpush.bf16.msra.mxu0 0
        %440 = vmatpush.bf16.msra.mxu0 0
        %441 = vmatpush.bf16.msra.mxu0 0
        %442 = vmatpush.bf16.msra.mxu0 %v408
        %443 = vmatpush.bf16.msra.mxu0 %v407
        %444 = vmatmul.bf16.gmra.mxu0 %v413
        %v445 = vpop.f32.mrf.mxu0
        %v446 = vadd.f32 %v397, %v445
        %v447 = vpop.f32.mrf.mxu0
        %v448 = vadd.f32 %v397, %v447
        %449 = vmatmul.bf16.gmra.mxu0 %v416
        %v450 = vpop.f32.mrf.mxu0
        %v451 = vadd.f32 %v397, %v450
        %v452 = vpop.f32.mrf.mxu0
        %v453 = vadd.f32 %v397, %v452
        %454 = vmatmul.bf16.gmra.mxu0 %v419
        %v455 = vpop.f32.mrf.mxu0
        %v456 = vadd.f32 %v397, %v455
        %v457 = vpop.f32.mrf.mxu0
        %v458 = vadd.f32 %v397, %v457
        %459 = vmatmul.bf16.gmra.mxu0 %v422
        %v460 = vpop.f32.mrf.mxu0
        %v461 = vadd.f32 %v397, %v460
        %v462 = vpop.f32.mrf.mxu0
        %v463 = vadd.f32 %v397, %v462
        %464 = vmatmul.bf16.gmra.mxu0 %v425
        %v465 = vpop.f32.mrf.mxu0
        %v466 = vadd.f32 %v397, %v465
        %v467 = vpop.f32.mrf.mxu0
        %v468 = vadd.f32 %v397, %v467
        %469 = vmatmul.bf16.gmra.mxu0 %v428
        %v470 = vpop.f32.mrf.mxu0
        %v471 = vadd.f32 %v397, %v470
        %v472 = vpop.f32.mrf.mxu0
        %v473 = vadd.f32 %v397, %v472
        %474 = vmatmul.bf16.gmra.mxu0 %v431
        %v475 = vpop.f32.mrf.mxu0
        %v476 = vadd.f32 %v397, %v475
        %v477 = vpop.f32.mrf.mxu0
        %v478 = vadd.f32 %v397, %v477
        %479 = vmatmul.bf16.gmra.mxu0 %v434
        %v480 = vpop.f32.mrf.mxu0
        %v481 = vadd.f32 %v397, %v480
        %v482 = vpop.f32.mrf.mxu0
        %v483 = vadd.f32 %v397, %v482
        %484 = vdwg.mxu0
        %v485 = vpack.c.bf16 %v446, %v446
        %v486 = vpack.c.bf16 %v448, %v448
        %v487 = vpack.c.bf16 %v451, %v451
        %v488 = vpack.c.bf16 %v453, %v453
        %v489 = vpack.c.bf16 %v456, %v456
        %v490 = vpack.c.bf16 %v458, %v458
        %v491 = vpack.c.bf16 %v461, %v461
        %v492 = vpack.c.bf16 %v463, %v463
        %v493 = vpack.c.bf16 %v466, %v466
        %v494 = vpack.c.bf16 %v468, %v468
        %v495 = vpack.c.bf16 %v471, %v471
        %v496 = vpack.c.bf16 %v473, %v473
        %v497 = vpack.c.bf16 %v476, %v476
        %v498 = vpack.c.bf16 %v478, %v478
        %v499 = vpack.c.bf16 %v481, %v481
        %v500 = vpack.c.bf16 %v483, %v483
        %vm501 = vcmask 265216
        %502 = vst.msk [vmem:[#allocation2] sm:$0xf] %vm501, %v485
        %503 = vst.msk [vmem:[#allocation2 + $0x4] sm:$0xf] %vm501, %v486
        %504 = vst.msk [vmem:[#allocation2 + $0x8] sm:$0xf] %vm501, %v487
        %505 = vst.msk [vmem:[#allocation2 + $0xc] sm:$0xf] %vm501, %v488
        %506 = vst.msk [vmem:[#allocation2 + $0x10] sm:$0xf] %vm501, %v489
        %507 = vst.msk [vmem:[#allocation2 + $0x14] sm:$0xf] %vm501, %v490
        %508 = vst.msk [vmem:[#allocation2 + $0x18] sm:$0xf] %vm501, %v491
        %509 = vst.msk [vmem:[#allocation2 + $0x1c] sm:$0xf] %vm501, %v492
        %510 = vst.msk [vmem:[#allocation2 + $0x20] sm:$0xf] %vm501, %v493
        %511 = vst.msk [vmem:[#allocation2 + $0x24] sm:$0xf] %vm501, %v494
        %512 = vst.msk [vmem:[#allocation2 + $0x28] sm:$0xf] %vm501, %v495
        %513 = vst.msk [vmem:[#allocation2 + $0x2c] sm:$0xf] %vm501, %v496
        %514 = vst.msk [vmem:[#allocation2 + $0x30] sm:$0xf] %vm501, %v497
        %515 = vst.msk [vmem:[#allocation2 + $0x34] sm:$0xf] %vm501, %v498
        %516 = vst.msk [vmem:[#allocation2 + $0x38] sm:$0xf] %vm501, %v499
        %517 = vst.msk [vmem:[#allocation2 + $0x3c] sm:$0xf] %vm501, %v500
        %vm518 = vcmask 7168
        %519 = vst.msk [vmem:[#allocation3] sm:$0xff] %vm518, -inf
        %520 = vst.msk [vmem:[#allocation3 + $0x8] sm:$0xff] %vm518, -inf
        %521 = vst.msk [vmem:[#allocation3 + $0x10] sm:$0xff] %vm518, -inf
        %522 = vst.msk [vmem:[#allocation3 + $0x18] sm:$0xff] %vm518, -inf
        %523 = vst.msk [vmem:[#allocation3 + $0x20] sm:$0xff] %vm518, -inf
        %524 = vst.msk [vmem:[#allocation3 + $0x28] sm:$0xff] %vm518, -inf
        %525 = vst.msk [vmem:[#allocation3 + $0x30] sm:$0xff] %vm518, -inf
        %526 = vst.msk [vmem:[#allocation3 + $0x38] sm:$0xff] %vm518, -inf
        %527 = vst.msk [vmem:[#allocation3 + $0x40] sm:$0xff] %vm518, -inf
        %528 = vst.msk [vmem:[#allocation3 + $0x48] sm:$0xff] %vm518, -inf
        %529 = vst.msk [vmem:[#allocation3 + $0x50] sm:$0xff] %vm518, -inf
        %530 = vst.msk [vmem:[#allocation3 + $0x58] sm:$0xff] %vm518, -inf
        %531 = vst.msk [vmem:[#allocation3 + $0x60] sm:$0xff] %vm518, -inf
        %532 = vst.msk [vmem:[#allocation3 + $0x68] sm:$0xff] %vm518, -inf
        %533 = vst.msk [vmem:[#allocation3 + $0x70] sm:$0xff] %vm518, -inf
        %534 = vst.msk [vmem:[#allocation3 + $0x78] sm:$0xff] %vm518, -inf
        %vm535 = vcmask 269312
        %536 = vst.msk [vmem:[#allocation4] sm:$0xff] %vm535, 0.0
        %537 = vst.msk [vmem:[#allocation4 + $0x8] sm:$0xff] %vm535, 0.0
        %538 = vst.msk [vmem:[#allocation4 + $0x10] sm:$0xff] %vm535, 0.0
        %539 = vst.msk [vmem:[#allocation4 + $0x18] sm:$0xff] %vm535, 0.0
        %540 = vst.msk [vmem:[#allocation4 + $0x20] sm:$0xff] %vm535, 0.0
        %541 = vst.msk [vmem:[#allocation4 + $0x28] sm:$0xff] %vm535, 0.0
        %542 = vst.msk [vmem:[#allocation4 + $0x30] sm:$0xff] %vm535, 0.0
        %543 = vst.msk [vmem:[#allocation4 + $0x38] sm:$0xff] %vm535, 0.0
        %544 = vst.msk [vmem:[#allocation4 + $0x40] sm:$0xff] %vm535, 0.0
        %545 = vst.msk [vmem:[#allocation4 + $0x48] sm:$0xff] %vm535, 0.0
        %546 = vst.msk [vmem:[#allocation4 + $0x50] sm:$0xff] %vm535, 0.0
        %547 = vst.msk [vmem:[#allocation4 + $0x58] sm:$0xff] %vm535, 0.0
        %548 = vst.msk [vmem:[#allocation4 + $0x60] sm:$0xff] %vm535, 0.0
        %549 = vst.msk [vmem:[#allocation4 + $0x68] sm:$0xff] %vm535, 0.0
        %550 = vst.msk [vmem:[#allocation4 + $0x70] sm:$0xff] %vm535, 0.0
        %551 = vst.msk [vmem:[#allocation4 + $0x78] sm:$0xff] %vm535, 0.0
      $region52: #{tpu_custom_call.1} parent=47 // pred_fallthru
        _
      %v552 = vld [vmem:[%s350] sm:$0xf]
      %v553 = vld [vmem:[%s350 + $0x4] sm:$0xf]
      %v554 = vld [vmem:[%s350 + $0x8] sm:$0xf]
      %v555 = vld [vmem:[%s350 + $0xc] sm:$0xf]
      %v556 = vld [vmem:[%s350 + $0x10] sm:$0xf]
      %v557 = vld [vmem:[%s350 + $0x14] sm:$0xf]
      %v558 = vld [vmem:[%s350 + $0x18] sm:$0xf]
      %v559 = vld [vmem:[%s350 + $0x1c] sm:$0xf]
      %v560 = vld [vmem:[%s350 + $0x20] sm:$0xf]
      %v561 = vld [vmem:[%s350 + $0x24] sm:$0xf]
      %v562 = vld [vmem:[%s350 + $0x28] sm:$0xf]
      %v563 = vld [vmem:[%s350 + $0x2c] sm:$0xf]
      %v564 = vld [vmem:[%s350 + $0x30] sm:$0xf]
      %v565 = vld [vmem:[%s350 + $0x34] sm:$0xf]
      %v566 = vld [vmem:[%s350 + $0x38] sm:$0xf]
      %v567 = vld [vmem:[%s350 + $0x3c] sm:$0xf]
      %v568 = vld [vmem:[#allocation2] sm:$0xf]
      %v569 = vld [vmem:[#allocation2 + $0x4] sm:$0xf]
      %v570 = vld [vmem:[#allocation2 + $0x8] sm:$0xf]
      %v571 = vld [vmem:[#allocation2 + $0xc] sm:$0xf]
      %v572 = vld [vmem:[#allocation2 + $0x10] sm:$0xf]
      %v573 = vld [vmem:[#allocation2 + $0x14] sm:$0xf]
      %v574 = vld [vmem:[#allocation2 + $0x18] sm:$0xf]
      %v575 = vld [vmem:[#allocation2 + $0x1c] sm:$0xf]
      %v576 = vld [vmem:[#allocation2 + $0x20] sm:$0xf]
      %v577 = vld [vmem:[#allocation2 + $0x24] sm:$0xf]
      %v578 = vld [vmem:[#allocation2 + $0x28] sm:$0xf]
      %v579 = vld [vmem:[#allocation2 + $0x2c] sm:$0xf]
      %v580 = vld [vmem:[#allocation2 + $0x30] sm:$0xf]
      %v581 = vld [vmem:[#allocation2 + $0x34] sm:$0xf]
      %v582 = vld [vmem:[#allocation2 + $0x38] sm:$0xf]
      %v583 = vld [vmem:[#allocation2 + $0x3c] sm:$0xf]
      %v600 = vunpack.c.l.b16 %v568
      %v601 = vunpack.c.l.b16 %v569
      %v602 = vunpack.c.l.b16 %v570
      %v603 = vunpack.c.l.b16 %v571
      %v604 = vunpack.c.l.b16 %v572
      %v605 = vunpack.c.l.b16 %v573
      %v606 = vunpack.c.l.b16 %v574
      %v607 = vunpack.c.l.b16 %v575
      %v608 = vunpack.c.l.b16 %v576
      %v609 = vunpack.c.l.b16 %v577
      %v610 = vunpack.c.l.b16 %v578
      %v611 = vunpack.c.l.b16 %v579
      %v612 = vunpack.c.l.b16 %v580
      %v613 = vunpack.c.l.b16 %v581
      %v614 = vunpack.c.l.b16 %v582
      %v615 = vunpack.c.l.b16 %v583
      %v616 = vpack.c.b16 %v601, %v600
      %v617 = vpack.c.b16 %v603, %v602
      %v618 = vpack.c.b16 %v605, %v604
      %v619 = vpack.c.b16 %v607, %v606
      %v620 = vpack.c.b16 %v609, %v608
      %v621 = vpack.c.b16 %v611, %v610
      %v622 = vpack.c.b16 %v613, %v612
      %v623 = vpack.c.b16 %v615, %v614
      %v640 = vunpack.c.l.b16 %v552
      %v641 = vunpack.c.l.b16 %v553
      %v642 = vunpack.c.l.b16 %v554
      %v643 = vunpack.c.l.b16 %v555
      %v644 = vunpack.c.l.b16 %v556
      %v645 = vunpack.c.l.b16 %v557
      %v646 = vunpack.c.l.b16 %v558
      %v647 = vunpack.c.l.b16 %v559
      %v648 = vunpack.c.l.b16 %v560
      %v649 = vunpack.c.l.b16 %v561
      %v650 = vunpack.c.l.b16 %v562
      %v651 = vunpack.c.l.b16 %v563
      %v652 = vunpack.c.l.b16 %v564
      %v653 = vunpack.c.l.b16 %v565
      %v654 = vunpack.c.l.b16 %v566
      %v655 = vunpack.c.l.b16 %v567
      %v656 = vpack.c.b16 %v641, %v640
      %v657 = vpack.c.b16 %v643, %v642
      %v658 = vpack.c.b16 %v645, %v644
      %v659 = vpack.c.b16 %v647, %v646
      %v660 = vpack.c.b16 %v649, %v648
      %v661 = vpack.c.b16 %v651, %v650
      %v662 = vpack.c.b16 %v653, %v652
      %v663 = vpack.c.b16 %v655, %v654
      %vm664 = vcmask 269312
      %v666 = vsel %vm664, %v616, 0
      %v669 = vsel %vm664, %v617, 0
      %v672 = vsel %vm664, %v618, 0
      %v675 = vsel %vm664, %v619, 0
      %v678 = vsel %vm664, %v620, 0
      %v681 = vsel %vm664, %v621, 0
      %v684 = vsel %vm664, %v622, 0
      %v687 = vsel %vm664, %v623, 0
      %v690 = vsel %vm664, %v656, 0
      %v693 = vsel %vm664, %v657, 0
      %v696 = vsel %vm664, %v658, 0
      %v699 = vsel %vm664, %v659, 0
      %v702 = vsel %vm664, %v660, 0
      %v705 = vsel %vm664, %v661, 0
      %v708 = vsel %vm664, %v662, 0
      %v711 = vsel %vm664, %v663, 0
      %713 = vmatpush.bf16.xpose.msra.mxu0 %v711
      %714 = vmatpush.bf16.xpose.msra.mxu0 %v708
      %715 = vmatpush.bf16.xpose.msra.mxu0 %v705
      %716 = vmatpush.bf16.xpose.msra.mxu0 %v702
      %717 = vmatpush.bf16.xpose.msra.mxu0 %v699
      %718 = vmatpush.bf16.xpose.msra.mxu0 %v696
      %719 = vmatpush.bf16.xpose.msra.mxu0 %v693
      %720 = vmatpush.bf16.xpose.msra.mxu0 %v690
      %721 = vmatmul.bf16.gmra.mxu0 %v666
      %v722 = vpop.f32.mrf.mxu0
      %v723 = vadd.f32 0.0, %v722
      %v724 = vpop.f32.mrf.mxu0
      %v725 = vadd.f32 0.0, %v724
      %726 = vmatmul.bf16.gmra.mxu0 %v669
      %v727 = vpop.f32.mrf.mxu0
      %v728 = vadd.f32 0.0, %v727
      %v729 = vpop.f32.mrf.mxu0
      %v730 = vadd.f32 0.0, %v729
      %731 = vmatmul.bf16.gmra.mxu0 %v672
      %v732 = vpop.f32.mrf.mxu0
      %v733 = vadd.f32 0.0, %v732
      %v734 = vpop.f32.mrf.mxu0
      %v735 = vadd.f32 0.0, %v734
      %736 = vmatmul.bf16.gmra.mxu0 %v675
      %v737 = vpop.f32.mrf.mxu0
      %v738 = vadd.f32 0.0, %v737
      %v739 = vpop.f32.mrf.mxu0
      %v740 = vadd.f32 0.0, %v739
      %741 = vmatmul.bf16.gmra.mxu0 %v678
      %v742 = vpop.f32.mrf.mxu0
      %v743 = vadd.f32 0.0, %v742
      %v744 = vpop.f32.mrf.mxu0
      %v745 = vadd.f32 0.0, %v744
      %746 = vmatmul.bf16.gmra.mxu0 %v681
      %v747 = vpop.f32.mrf.mxu0
      %v748 = vadd.f32 0.0, %v747
      %v749 = vpop.f32.mrf.mxu0
      %v750 = vadd.f32 0.0, %v749
      %751 = vmatmul.bf16.gmra.mxu0 %v684
      %v752 = vpop.f32.mrf.mxu0
      %v753 = vadd.f32 0.0, %v752
      %v754 = vpop.f32.mrf.mxu0
      %v755 = vadd.f32 0.0, %v754
      %756 = vmatmul.bf16.gmra.mxu0 %v687
      %v757 = vpop.f32.mrf.mxu0
      %v758 = vadd.f32 0.0, %v757
      %v759 = vpop.f32.mrf.mxu0
      %v760 = vadd.f32 0.0, %v759
      %761 = vdwg.mxu0
      %v762 = vld [vmem:[#allocation3] sm:$0xff]
      %v763 = vld [vmem:[#allocation3 + $0x8] sm:$0xff]
      %v764 = vld [vmem:[#allocation3 + $0x10] sm:$0xff]
      %v765 = vld [vmem:[#allocation3 + $0x18] sm:$0xff]
      %v766 = vld [vmem:[#allocation3 + $0x20] sm:$0xff]
      %v767 = vld [vmem:[#allocation3 + $0x28] sm:$0xff]
      %v768 = vld [vmem:[#allocation3 + $0x30] sm:$0xff]
      %v769 = vld [vmem:[#allocation3 + $0x38] sm:$0xff]
      %v770 = vld [vmem:[#allocation3 + $0x40] sm:$0xff]
      %v771 = vld [vmem:[#allocation3 + $0x48] sm:$0xff]
      %v772 = vld [vmem:[#allocation3 + $0x50] sm:$0xff]
      %v773 = vld [vmem:[#allocation3 + $0x58] sm:$0xff]
      %v774 = vld [vmem:[#allocation3 + $0x60] sm:$0xff]
      %v775 = vld [vmem:[#allocation3 + $0x68] sm:$0xff]
      %v776 = vld [vmem:[#allocation3 + $0x70] sm:$0xff]
      %v777 = vld [vmem:[#allocation3 + $0x78] sm:$0xff]
      %778 = vmax.xlane.f32.xlu0 %v723
      %v779 = vpop.xlane.xlu0 %778
      %780 = vmax.xlane.f32.xlu0 %v725
      %v781 = vpop.xlane.xlu0 %780
      %782 = vmax.xlane.f32.xlu0 %v728
      %v783 = vpop.xlane.xlu0 %782
      %784 = vmax.xlane.f32.xlu0 %v730
      %v785 = vpop.xlane.xlu0 %784
      %786 = vmax.xlane.f32.xlu0 %v733
      %v787 = vpop.xlane.xlu0 %786
      %788 = vmax.xlane.f32.xlu0 %v735
      %v789 = vpop.xlane.xlu0 %788
      %790 = vmax.xlane.f32.xlu0 %v738
      %v791 = vpop.xlane.xlu0 %790
      %792 = vmax.xlane.f32.xlu0 %v740
      %v793 = vpop.xlane.xlu0 %792
      %794 = vmax.xlane.f32.xlu0 %v743
      %v795 = vpop.xlane.xlu0 %794
      %796 = vmax.xlane.f32.xlu0 %v745
      %v797 = vpop.xlane.xlu0 %796
      %798 = vmax.xlane.f32.xlu0 %v748
      %v799 = vpop.xlane.xlu0 %798
      %800 = vmax.xlane.f32.xlu0 %v750
      %v801 = vpop.xlane.xlu0 %800
      %802 = vmax.xlane.f32.xlu0 %v753
      %v803 = vpop.xlane.xlu0 %802
      %804 = vmax.xlane.f32.xlu0 %v755
      %v805 = vpop.xlane.xlu0 %804
      %806 = vmax.xlane.f32.xlu0 %v758
      %v807 = vpop.xlane.xlu0 %806
      %808 = vmax.xlane.f32.xlu0 %v760
      %v809 = vpop.xlane.xlu0 %808
      %v810 = vmax.f32 %v762, %v779
      %v811 = vmax.f32 %v763, %v781
      %v812 = vmax.f32 %v764, %v783
      %v813 = vmax.f32 %v765, %v785
      %v814 = vmax.f32 %v766, %v787
      %v815 = vmax.f32 %v767, %v789
      %v816 = vmax.f32 %v768, %v791
      %v817 = vmax.f32 %v769, %v793
      %v818 = vmax.f32 %v770, %v795
      %v819 = vmax.f32 %v771, %v797
      %v820 = vmax.f32 %v772, %v799
      %v821 = vmax.f32 %v773, %v801
      %v822 = vmax.f32 %v774, %v803
      %v823 = vmax.f32 %v775, %v805
      %v824 = vmax.f32 %v776, %v807
      %v825 = vmax.f32 %v777, %v809
      %v826 = vsub.f32 %v762, %v810
      %v827 = vsub.f32 %v763, %v811
      %v828 = vsub.f32 %v764, %v812
      %v829 = vsub.f32 %v765, %v813
      %v830 = vsub.f32 %v766, %v814
      %v831 = vsub.f32 %v767, %v815
      %v832 = vsub.f32 %v768, %v816
      %v833 = vsub.f32 %v769, %v817
      %v834 = vsub.f32 %v770, %v818
      %v835 = vsub.f32 %v771, %v819
      %v836 = vsub.f32 %v772, %v820
      %v837 = vsub.f32 %v773, %v821
      %v838 = vsub.f32 %v774, %v822
      %v839 = vsub.f32 %v775, %v823
      %v840 = vsub.f32 %v776, %v824
      %v841 = vsub.f32 %v777, %v825
      %v842 = vmul.f32 %v826, 1.442695
      %v843 = vpow.pop %v842
      %v844 = vmul.f32 %v827, 1.442695
      %v845 = vpow.pop %v844
      %v846 = vmul.f32 %v828, 1.442695
      %v847 = vpow.pop %v846
      %v848 = vmul.f32 %v829, 1.442695
      %v849 = vpow.pop %v848
      %v850 = vmul.f32 %v830, 1.442695
      %v851 = vpow.pop %v850
      %v852 = vmul.f32 %v831, 1.442695
      %v853 = vpow.pop %v852
      %v854 = vmul.f32 %v832, 1.442695
      %v855 = vpow.pop %v854
      %v856 = vmul.f32 %v833, 1.442695
      %v857 = vpow.pop %v856
      %v858 = vmul.f32 %v834, 1.442695
      %v859 = vpow.pop %v858
      %v860 = vmul.f32 %v835, 1.442695
      %v861 = vpow.pop %v860
      %v862 = vmul.f32 %v836, 1.442695
      %v863 = vpow.pop %v862
      %v864 = vmul.f32 %v837, 1.442695
      %v865 = vpow.pop %v864
      %v866 = vmul.f32 %v838, 1.442695
      %v867 = vpow.pop %v866
      %v868 = vmul.f32 %v839, 1.442695
      %v869 = vpow.pop %v868
      %v870 = vmul.f32 %v840, 1.442695
      %v871 = vpow.pop %v870
      %v872 = vmul.f32 %v841, 1.442695
      %v873 = vpow.pop %v872
      %875 = vset.pattern.permute.xlu0 0
      %876 = vperm.xlu0 %875, %v810
      %v877 = vpop.permute.xlu0 %876
      %880 = vset.pattern.permute.xlu0 0
      %881 = vperm.xlu0 %880, %v811
      %v882 = vpop.permute.xlu0 %881
      %885 = vset.pattern.permute.xlu0 0
      %886 = vperm.xlu0 %885, %v812
      %v887 = vpop.permute.xlu0 %886
      %890 = vset.pattern.permute.xlu0 0
      %891 = vperm.xlu0 %890, %v813
      %v892 = vpop.permute.xlu0 %891
      %895 = vset.pattern.permute.xlu0 0
      %896 = vperm.xlu0 %895, %v814
      %v897 = vpop.permute.xlu0 %896
      %900 = vset.pattern.permute.xlu0 0
      %901 = vperm.xlu0 %900, %v815
      %v902 = vpop.permute.xlu0 %901
      %905 = vset.pattern.permute.xlu0 0
      %906 = vperm.xlu0 %905, %v816
      %v907 = vpop.permute.xlu0 %906
      %910 = vset.pattern.permute.xlu0 0
      %911 = vperm.xlu0 %910, %v817
      %v912 = vpop.permute.xlu0 %911
      %915 = vset.pattern.permute.xlu0 0
      %916 = vperm.xlu0 %915, %v818
      %v917 = vpop.permute.xlu0 %916
      %920 = vset.pattern.permute.xlu0 0
      %921 = vperm.xlu0 %920, %v819
      %v922 = vpop.permute.xlu0 %921
      %925 = vset.pattern.permute.xlu0 0
      %926 = vperm.xlu0 %925, %v820
      %v927 = vpop.permute.xlu0 %926
      %930 = vset.pattern.permute.xlu0 0
      %931 = vperm.xlu0 %930, %v821
      %v932 = vpop.permute.xlu0 %931
      %935 = vset.pattern.permute.xlu0 0
      %936 = vperm.xlu0 %935, %v822
      %v937 = vpop.permute.xlu0 %936
      %940 = vset.pattern.permute.xlu0 0
      %941 = vperm.xlu0 %940, %v823
      %v942 = vpop.permute.xlu0 %941
      %945 = vset.pattern.permute.xlu0 0
      %946 = vperm.xlu0 %945, %v824
      %v947 = vpop.permute.xlu0 %946
      %950 = vset.pattern.permute.xlu0 0
      %951 = vperm.xlu0 %950, %v825
      %v952 = vpop.permute.xlu0 %951
      %v954 = vsub.f32 %v723, %v877
      %v955 = vsub.f32 %v725, %v882
      %v956 = vsub.f32 %v728, %v887
      %v957 = vsub.f32 %v730, %v892
      %v958 = vsub.f32 %v733, %v897
      %v959 = vsub.f32 %v735, %v902
      %v960 = vsub.f32 %v738, %v907
      %v961 = vsub.f32 %v740, %v912
      %v962 = vsub.f32 %v743, %v917
      %v963 = vsub.f32 %v745, %v922
      %v964 = vsub.f32 %v748, %v927
      %v965 = vsub.f32 %v750, %v932
      %v966 = vsub.f32 %v753, %v937
      %v967 = vsub.f32 %v755, %v942
      %v968 = vsub.f32 %v758, %v947
      %v969 = vsub.f32 %v760, %v952
      %v970 = vmul.f32 %v954, 1.442695
      %v971 = vpow.pop %v970
      %v972 = vmul.f32 %v955, 1.442695
      %v973 = vpow.pop %v972
      %v974 = vmul.f32 %v956, 1.442695
      %v975 = vpow.pop %v974
      %v976 = vmul.f32 %v957, 1.442695
      %v977 = vpow.pop %v976
      %v978 = vmul.f32 %v958, 1.442695
      %v979 = vpow.pop %v978
      %v980 = vmul.f32 %v959, 1.442695
      %v981 = vpow.pop %v980
      %v982 = vmul.f32 %v960, 1.442695
      %v983 = vpow.pop %v982
      %v984 = vmul.f32 %v961, 1.442695
      %v985 = vpow.pop %v984
      %v986 = vmul.f32 %v962, 1.442695
      %v987 = vpow.pop %v986
      %v988 = vmul.f32 %v963, 1.442695
      %v989 = vpow.pop %v988
      %v990 = vmul.f32 %v964, 1.442695
      %v991 = vpow.pop %v990
      %v992 = vmul.f32 %v965, 1.442695
      %v993 = vpow.pop %v992
      %v994 = vmul.f32 %v966, 1.442695
      %v995 = vpow.pop %v994
      %v996 = vmul.f32 %v967, 1.442695
      %v997 = vpow.pop %v996
      %v998 = vmul.f32 %v968, 1.442695
      %v999 = vpow.pop %v998
      %v1000 = vmul.f32 %v969, 1.442695
      %v1001 = vpow.pop %v1000
      %v1002 = vpack.c.bf16 %v973, %v971
      %v1003 = vpack.c.bf16 %v977, %v975
      %v1004 = vpack.c.bf16 %v981, %v979
      %v1005 = vpack.c.bf16 %v985, %v983
      %v1006 = vpack.c.bf16 %v989, %v987
      %v1007 = vpack.c.bf16 %v993, %v991
      %v1008 = vpack.c.bf16 %v997, %v995
      %v1009 = vpack.c.bf16 %v1001, %v999
      %v1010 = vld [vmem:[#allocation4] sm:$0xff]
      %v1011 = vld [vmem:[#allocation4 + $0x8] sm:$0xff]
      %v1012 = vld [vmem:[#allocation4 + $0x10] sm:$0xff]
      %v1013 = vld [vmem:[#allocation4 + $0x18] sm:$0xff]
      %v1014 = vld [vmem:[#allocation4 + $0x20] sm:$0xff]
      %v1015 = vld [vmem:[#allocation4 + $0x28] sm:$0xff]
      %v1016 = vld [vmem:[#allocation4 + $0x30] sm:$0xff]
      %v1017 = vld [vmem:[#allocation4 + $0x38] sm:$0xff]
      %v1018 = vld [vmem:[#allocation4 + $0x40] sm:$0xff]
      %v1019 = vld [vmem:[#allocation4 + $0x48] sm:$0xff]
      %v1020 = vld [vmem:[#allocation4 + $0x50] sm:$0xff]
      %v1021 = vld [vmem:[#allocation4 + $0x58] sm:$0xff]
      %v1022 = vld [vmem:[#allocation4 + $0x60] sm:$0xff]
      %v1023 = vld [vmem:[#allocation4 + $0x68] sm:$0xff]
      %v1024 = vld [vmem:[#allocation4 + $0x70] sm:$0xff]
      %v1025 = vld [vmem:[#allocation4 + $0x78] sm:$0xff]
      %1027 = vset.pattern.permute.xlu0 0
      %1028 = vperm.xlu0 %1027, %v843
      %v1029 = vpop.permute.xlu0 %1028
      %1032 = vset.pattern.permute.xlu0 0
      %1033 = vperm.xlu0 %1032, %v845
      %v1034 = vpop.permute.xlu0 %1033
      %1037 = vset.pattern.permute.xlu0 0
      %1038 = vperm.xlu0 %1037, %v847
      %v1039 = vpop.permute.xlu0 %1038
      %1042 = vset.pattern.permute.xlu0 0
      %1043 = vperm.xlu0 %1042, %v849
      %v1044 = vpop.permute.xlu0 %1043
      %1047 = vset.pattern.permute.xlu0 0
      %1048 = vperm.xlu0 %1047, %v851
      %v1049 = vpop.permute.xlu0 %1048
      %1052 = vset.pattern.permute.xlu0 0
      %1053 = vperm.xlu0 %1052, %v853
      %v1054 = vpop.permute.xlu0 %1053
      %1057 = vset.pattern.permute.xlu0 0
      %1058 = vperm.xlu0 %1057, %v855
      %v1059 = vpop.permute.xlu0 %1058
      %1062 = vset.pattern.permute.xlu0 0
      %1063 = vperm.xlu0 %1062, %v857
      %v1064 = vpop.permute.xlu0 %1063
      %1067 = vset.pattern.permute.xlu0 0
      %1068 = vperm.xlu0 %1067, %v859
      %v1069 = vpop.permute.xlu0 %1068
      %1072 = vset.pattern.permute.xlu0 0
      %1073 = vperm.xlu0 %1072, %v861
      %v1074 = vpop.permute.xlu0 %1073
      %1077 = vset.pattern.permute.xlu0 0
      %1078 = vperm.xlu0 %1077, %v863
      %v1079 = vpop.permute.xlu0 %1078
      %1082 = vset.pattern.permute.xlu0 0
      %1083 = vperm.xlu0 %1082, %v865
      %v1084 = vpop.permute.xlu0 %1083
      %1087 = vset.pattern.permute.xlu0 0
      %1088 = vperm.xlu0 %1087, %v867
      %v1089 = vpop.permute.xlu0 %1088
      %1092 = vset.pattern.permute.xlu0 0
      %1093 = vperm.xlu0 %1092, %v869
      %v1094 = vpop.permute.xlu0 %1093
      %1097 = vset.pattern.permute.xlu0 0
      %1098 = vperm.xlu0 %1097, %v871
      %v1099 = vpop.permute.xlu0 %1098
      %1102 = vset.pattern.permute.xlu0 0
      %1103 = vperm.xlu0 %1102, %v873
      %v1104 = vpop.permute.xlu0 %1103
      %v1106 = vmul.f32 %v1029, %v1010
      %v1107 = vmul.f32 %v1034, %v1011
      %v1108 = vmul.f32 %v1039, %v1012
      %v1109 = vmul.f32 %v1044, %v1013
      %v1110 = vmul.f32 %v1049, %v1014
      %v1111 = vmul.f32 %v1054, %v1015
      %v1112 = vmul.f32 %v1059, %v1016
      %v1113 = vmul.f32 %v1064, %v1017
      %v1114 = vmul.f32 %v1069, %v1018
      %v1115 = vmul.f32 %v1074, %v1019
      %v1116 = vmul.f32 %v1079, %v1020
      %v1117 = vmul.f32 %v1084, %v1021
      %v1118 = vmul.f32 %v1089, %v1022
      %v1119 = vmul.f32 %v1094, %v1023
      %v1120 = vmul.f32 %v1099, %v1024
      %v1121 = vmul.f32 %v1104, %v1025
      %1130 = vmatpush.bf16.msra.mxu0 %v663
      %1131 = vmatpush.bf16.msra.mxu0 %v662
      %1132 = vmatpush.bf16.msra.mxu0 %v661
      %1133 = vmatpush.bf16.msra.mxu0 %v660
      %1134 = vmatpush.bf16.msra.mxu0 %v659
      %1135 = vmatpush.bf16.msra.mxu0 %v658
      %1136 = vmatpush.bf16.msra.mxu0 %v657
      %1137 = vmatpush.bf16.msra.mxu0 %v656
      %1138 = vmatmul.bf16.gmra.mxu0 %v1002
      %v1139 = vpop.f32.mrf.mxu0
      %v1140 = vadd.f32 0.0, %v1139
      %v1141 = vpop.f32.mrf.mxu0
      %v1142 = vadd.f32 0.0, %v1141
      %1143 = vmatmul.bf16.gmra.mxu0 %v1003
      %v1144 = vpop.f32.mrf.mxu0
      %v1145 = vadd.f32 0.0, %v1144
      %v1146 = vpop.f32.mrf.mxu0
      %v1147 = vadd.f32 0.0, %v1146
      %1148 = vmatmul.bf16.gmra.mxu0 %v1004
      %v1149 = vpop.f32.mrf.mxu0
      %v1150 = vadd.f32 0.0, %v1149
      %v1151 = vpop.f32.mrf.mxu0
      %v1152 = vadd.f32 0.0, %v1151
      %1153 = vmatmul.bf16.gmra.mxu0 %v1005
      %v1154 = vpop.f32.mrf.mxu0
      %v1155 = vadd.f32 0.0, %v1154
      %v1156 = vpop.f32.mrf.mxu0
      %v1157 = vadd.f32 0.0, %v1156
      %1158 = vmatmul.bf16.gmra.mxu0 %v1006
      %v1159 = vpop.f32.mrf.mxu0
      %v1160 = vadd.f32 0.0, %v1159
      %v1161 = vpop.f32.mrf.mxu0
      %v1162 = vadd.f32 0.0, %v1161
      %1163 = vmatmul.bf16.gmra.mxu0 %v1007
      %v1164 = vpop.f32.mrf.mxu0
      %v1165 = vadd.f32 0.0, %v1164
      %v1166 = vpop.f32.mrf.mxu0
      %v1167 = vadd.f32 0.0, %v1166
      %1168 = vmatmul.bf16.gmra.mxu0 %v1008
      %v1169 = vpop.f32.mrf.mxu0
      %v1170 = vadd.f32 0.0, %v1169
      %v1171 = vpop.f32.mrf.mxu0
      %v1172 = vadd.f32 0.0, %v1171
      %1173 = vmatmul.bf16.gmra.mxu0 %v1009
      %v1174 = vpop.f32.mrf.mxu0
      %v1175 = vadd.f32 0.0, %v1174
      %v1176 = vpop.f32.mrf.mxu0
      %v1177 = vadd.f32 0.0, %v1176
      %1178 = vdwg.mxu0
      %v1179 = vadd.f32 %v1106, %v1140
      %v1180 = vadd.f32 %v1107, %v1142
      %v1181 = vadd.f32 %v1108, %v1145
      %v1182 = vadd.f32 %v1109, %v1147
      %v1183 = vadd.f32 %v1110, %v1150
      %v1184 = vadd.f32 %v1111, %v1152
      %v1185 = vadd.f32 %v1112, %v1155
      %v1186 = vadd.f32 %v1113, %v1157
      %v1187 = vadd.f32 %v1114, %v1160
      %v1188 = vadd.f32 %v1115, %v1162
      %v1189 = vadd.f32 %v1116, %v1165
      %v1190 = vadd.f32 %v1117, %v1167
      %v1191 = vadd.f32 %v1118, %v1170
      %v1192 = vadd.f32 %v1119, %v1172
      %v1193 = vadd.f32 %v1120, %v1175
      %v1194 = vadd.f32 %v1121, %v1177
      %1195 = vst.msk [vmem:[#allocation4] sm:$0xff] %vm664, %v1179
      %1196 = vst.msk [vmem:[#allocation4 + $0x8] sm:$0xff] %vm664, %v1180
      %1197 = vst.msk [vmem:[#allocation4 + $0x10] sm:$0xff] %vm664, %v1181
      %1198 = vst.msk [vmem:[#allocation4 + $0x18] sm:$0xff] %vm664, %v1182
      %1199 = vst.msk [vmem:[#allocation4 + $0x20] sm:$0xff] %vm664, %v1183
      %1200 = vst.msk [vmem:[#allocation4 + $0x28] sm:$0xff] %vm664, %v1184
      %1201 = vst.msk [vmem:[#allocation4 + $0x30] sm:$0xff] %vm664, %v1185
      %1202 = vst.msk [vmem:[#allocation4 + $0x38] sm:$0xff] %vm664, %v1186
      %1203 = vst.msk [vmem:[#allocation4 + $0x40] sm:$0xff] %vm664, %v1187
      %1204 = vst.msk [vmem:[#allocation4 + $0x48] sm:$0xff] %vm664, %v1188
      %1205 = vst.msk [vmem:[#allocation4 + $0x50] sm:$0xff] %vm664, %v1189
      %1206 = vst.msk [vmem:[#allocation4 + $0x58] sm:$0xff] %vm664, %v1190
      %1207 = vst.msk [vmem:[#allocation4 + $0x60] sm:$0xff] %vm664, %v1191
      %1208 = vst.msk [vmem:[#allocation4 + $0x68] sm:$0xff] %vm664, %v1192
      %1209 = vst.msk [vmem:[#allocation4 + $0x70] sm:$0xff] %vm664, %v1193
      %1210 = vst.msk [vmem:[#allocation4 + $0x78] sm:$0xff] %vm664, %v1194
      %vm1211 = vcmask 7168
      %1212 = vst.msk [vmem:[#allocation3] sm:$0xff] %vm1211, %v810
      %1213 = vst.msk [vmem:[#allocation3 + $0x8] sm:$0xff] %vm1211, %v811
      %1214 = vst.msk [vmem:[#allocation3 + $0x10] sm:$0xff] %vm1211, %v812
      %1215 = vst.msk [vmem:[#allocation3 + $0x18] sm:$0xff] %vm1211, %v813
      %1216 = vst.msk [vmem:[#allocation3 + $0x20] sm:$0xff] %vm1211, %v814
      %1217 = vst.msk [vmem:[#allocation3 + $0x28] sm:$0xff] %vm1211, %v815
      %1218 = vst.msk [vmem:[#allocation3 + $0x30] sm:$0xff] %vm1211, %v816
      %1219 = vst.msk [vmem:[#allocation3 + $0x38] sm:$0xff] %vm1211, %v817
      %1220 = vst.msk [vmem:[#allocation3 + $0x40] sm:$0xff] %vm1211, %v818
      %1221 = vst.msk [vmem:[#allocation3 + $0x48] sm:$0xff] %vm1211, %v819
      %1222 = vst.msk [vmem:[#allocation3 + $0x50] sm:$0xff] %vm1211, %v820
      %1223 = vst.msk [vmem:[#allocation3 + $0x58] sm:$0xff] %vm1211, %v821
      %1224 = vst.msk [vmem:[#allocation3 + $0x60] sm:$0xff] %vm1211, %v822
      %1225 = vst.msk [vmem:[#allocation3 + $0x68] sm:$0xff] %vm1211, %v823
      %1226 = vst.msk [vmem:[#allocation3 + $0x70] sm:$0xff] %vm1211, %v824
      %1227 = vst.msk [vmem:[#allocation3 + $0x78] sm:$0xff] %vm1211, %v825
      %p1228 = scmp.eq.s32.totalorder %s26, 1
      // Predicated region
      $region53: #{tpu_custom_call.1} parent=47 // pred_check
        %p1229 = pneg %p1228
      $region54: #{tpu_custom_call.1} parent=47 // pred_check_branch
        %1231 = sbr.rel (%p1229) target = $region56
      $region55: #{tpu_custom_call.1} parent=47 // pred_region
        %v1232 = vld [vmem:[#allocation4] sm:$0xff]
        %v1233 = vld [vmem:[#allocation4 + $0x8] sm:$0xff]
        %v1234 = vld [vmem:[#allocation4 + $0x10] sm:$0xff]
        %v1235 = vld [vmem:[#allocation4 + $0x18] sm:$0xff]
        %v1236 = vld [vmem:[#allocation4 + $0x20] sm:$0xff]
        %v1237 = vld [vmem:[#allocation4 + $0x28] sm:$0xff]
        %v1238 = vld [vmem:[#allocation4 + $0x30] sm:$0xff]
        %v1239 = vld [vmem:[#allocation4 + $0x38] sm:$0xff]
        %v1240 = vld [vmem:[#allocation4 + $0x40] sm:$0xff]
        %v1241 = vld [vmem:[#allocation4 + $0x48] sm:$0xff]
        %v1242 = vld [vmem:[#allocation4 + $0x50] sm:$0xff]
        %v1243 = vld [vmem:[#allocation4 + $0x58] sm:$0xff]
        %v1244 = vld [vmem:[#allocation4 + $0x60] sm:$0xff]
        %v1245 = vld [vmem:[#allocation4 + $0x68] sm:$0xff]
        %v1246 = vld [vmem:[#allocation4 + $0x70] sm:$0xff]
        %v1247 = vld [vmem:[#allocation4 + $0x78] sm:$0xff]
        %v1248 = vrcp.pop %v1232
        %v1249 = vrcp.pop %v1233
        %v1250 = vrcp.pop %v1234
        %v1251 = vrcp.pop %v1235
        %v1252 = vrcp.pop %v1236
        %v1253 = vrcp.pop %v1237
        %v1254 = vrcp.pop %v1238
        %v1255 = vrcp.pop %v1239
        %v1256 = vrcp.pop %v1240
        %v1257 = vrcp.pop %v1241
        %v1258 = vrcp.pop %v1242
        %v1259 = vrcp.pop %v1243
        %v1260 = vrcp.pop %v1244
        %v1261 = vrcp.pop %v1245
        %v1262 = vrcp.pop %v1246
        %v1263 = vrcp.pop %v1247
        %1265 = vset.pattern.permute.xlu0 32
        %1266 = vperm.xlu0 %1265, %v1248
        %v1267 = vpop.permute.xlu0 %1266
        %1270 = vset.pattern.permute.xlu0 32
        %1271 = vperm.xlu0 %1270, %v1249
        %v1272 = vpop.permute.xlu0 %1271
        %1275 = vset.pattern.permute.xlu0 32
        %1276 = vperm.xlu0 %1275, %v1250
        %v1277 = vpop.permute.xlu0 %1276
        %1280 = vset.pattern.permute.xlu0 32
        %1281 = vperm.xlu0 %1280, %v1251
        %v1282 = vpop.permute.xlu0 %1281
        %1285 = vset.pattern.permute.xlu0 32
        %1286 = vperm.xlu0 %1285, %v1252
        %v1287 = vpop.permute.xlu0 %1286
        %1290 = vset.pattern.permute.xlu0 32
        %1291 = vperm.xlu0 %1290, %v1253
        %v1292 = vpop.permute.xlu0 %1291
        %1295 = vset.pattern.permute.xlu0 32
        %1296 = vperm.xlu0 %1295, %v1254
        %v1297 = vpop.permute.xlu0 %1296
        %1300 = vset.pattern.permute.xlu0 32
        %1301 = vperm.xlu0 %1300, %v1255
        %v1302 = vpop.permute.xlu0 %1301
        %1305 = vset.pattern.permute.xlu0 32
        %1306 = vperm.xlu0 %1305, %v1256
        %v1307 = vpop.permute.xlu0 %1306
        %1310 = vset.pattern.permute.xlu0 32
        %1311 = vperm.xlu0 %1310, %v1257
        %v1312 = vpop.permute.xlu0 %1311
        %1315 = vset.pattern.permute.xlu0 32
        %1316 = vperm.xlu0 %1315, %v1258
        %v1317 = vpop.permute.xlu0 %1316
        %1320 = vset.pattern.permute.xlu0 32
        %1321 = vperm.xlu0 %1320, %v1259
        %v1322 = vpop.permute.xlu0 %1321
        %1325 = vset.pattern.permute.xlu0 32
        %1326 = vperm.xlu0 %1325, %v1260
        %v1327 = vpop.permute.xlu0 %1326
        %1330 = vset.pattern.permute.xlu0 32
        %1331 = vperm.xlu0 %1330, %v1261
        %v1332 = vpop.permute.xlu0 %1331
        %1335 = vset.pattern.permute.xlu0 32
        %1336 = vperm.xlu0 %1335, %v1262
        %v1337 = vpop.permute.xlu0 %1336
        %1340 = vset.pattern.permute.xlu0 32
        %1341 = vperm.xlu0 %1340, %v1263
        %v1342 = vpop.permute.xlu0 %1341
        %v1344 = vmul.f32 %v1232, %v1267
        %v1345 = vmul.f32 %v1233, %v1272
        %v1346 = vmul.f32 %v1234, %v1277
        %v1347 = vmul.f32 %v1235, %v1282
        %v1348 = vmul.f32 %v1236, %v1287
        %v1349 = vmul.f32 %v1237, %v1292
        %v1350 = vmul.f32 %v1238, %v1297
        %v1351 = vmul.f32 %v1239, %v1302
        %v1352 = vmul.f32 %v1240, %v1307
        %v1353 = vmul.f32 %v1241, %v1312
        %v1354 = vmul.f32 %v1242, %v1317
        %v1355 = vmul.f32 %v1243, %v1322
        %v1356 = vmul.f32 %v1244, %v1327
        %v1357 = vmul.f32 %v1245, %v1332
        %v1358 = vmul.f32 %v1246, %v1337
        %v1359 = vmul.f32 %v1247, %v1342
        %v1360 = vpack.c.bf16 %v1345, %v1344
        %v1361 = vpack.c.bf16 %v1347, %v1346
        %v1362 = vpack.c.bf16 %v1349, %v1348
        %v1363 = vpack.c.bf16 %v1351, %v1350
        %v1364 = vpack.c.bf16 %v1353, %v1352
        %v1365 = vpack.c.bf16 %v1355, %v1354
        %v1366 = vpack.c.bf16 %v1357, %v1356
        %v1367 = vpack.c.bf16 %v1359, %v1358
        %v1368 = vld [vmem:[%s4] sm:$0xf]
        %v1369 = vld [vmem:[%s4 + $0x4] sm:$0xf]
        %v1370 = vld [vmem:[%s4 + $0x8] sm:$0xf]
        %v1371 = vld [vmem:[%s4 + $0xc] sm:$0xf]
        %v1372 = vld [vmem:[%s4 + $0x10] sm:$0x1]
        %v1373 = vld [vmem:[%s5] sm:$0x1]
        %v1375 = vperm.slane %v1373, 0
        %v1382 = vunpack.c.l.b16 %v1368
        %v1383 = vunpack.c.l.b16 %v1369
        %v1384 = vunpack.c.l.b16 %v1370
        %v1385 = vunpack.c.l.b16 %v1371
        %v1386 = vunpack.c.l.b16 %v1372
        %v1387 = vpack.c.b16 %v1383, %v1382
        %v1388 = vpack.c.b16 %v1385, %v1384
        %v1389 = vpack.c.b16 %v1386, %v1386
        %v1393 = vsel %vm664, %v1360, 0
        %v1396 = vsel %vm664, %v1361, 0
        %v1399 = vsel %vm664, %v1362, 0
        %v1402 = vsel %vm664, %v1363, 0
        %v1405 = vsel %vm664, %v1364, 0
        %v1408 = vsel %vm664, %v1365, 0
        %v1411 = vsel %vm664, %v1366, 0
        %v1414 = vsel %vm664, %v1367, 0
        %vm1416 = vcmask 1040384
        %v1417 = vsel 0, 4294967295, 65535
        %v1418 = vsel %vm1416, %v1417, 0
        %v1420 = vand.u32 %v1389, %v1418
        %1422 = vmatpush.bf16.msra.mxu0 0
        %1423 = vmatpush.bf16.msra.mxu0 0
        %1424 = vmatpush.bf16.msra.mxu0 0
        %1425 = vmatpush.bf16.msra.mxu0 0
        %1426 = vmatpush.bf16.msra.mxu0 0
        %1427 = vmatpush.bf16.msra.mxu0 %v1420
        %1428 = vmatpush.bf16.msra.mxu0 %v1388
        %1429 = vmatpush.bf16.msra.mxu0 %v1387
        %1430 = vmatmul.bf16.gmra.mxu0 %v1393
        %v1431 = vpop.f32.mrf.mxu0
        %v1432 = vadd.f32 %v1375, %v1431
        %v1433 = vpop.f32.mrf.mxu0
        %v1434 = vadd.f32 %v1375, %v1433
        %1435 = vmatmul.bf16.gmra.mxu0 %v1396
        %v1436 = vpop.f32.mrf.mxu0
        %v1437 = vadd.f32 %v1375, %v1436
        %v1438 = vpop.f32.mrf.mxu0
        %v1439 = vadd.f32 %v1375, %v1438
        %1440 = vmatmul.bf16.gmra.mxu0 %v1399
        %v1441 = vpop.f32.mrf.mxu0
        %v1442 = vadd.f32 %v1375, %v1441
        %v1443 = vpop.f32.mrf.mxu0
        %v1444 = vadd.f32 %v1375, %v1443
        %1445 = vmatmul.bf16.gmra.mxu0 %v1402
        %v1446 = vpop.f32.mrf.mxu0
        %v1447 = vadd.f32 %v1375, %v1446
        %v1448 = vpop.f32.mrf.mxu0
        %v1449 = vadd.f32 %v1375, %v1448
        %1450 = vmatmul.bf16.gmra.mxu0 %v1405
        %v1451 = vpop.f32.mrf.mxu0
        %v1452 = vadd.f32 %v1375, %v1451
        %v1453 = vpop.f32.mrf.mxu0
        %v1454 = vadd.f32 %v1375, %v1453
        %1455 = vmatmul.bf16.gmra.mxu0 %v1408
        %v1456 = vpop.f32.mrf.mxu0
        %v1457 = vadd.f32 %v1375, %v1456
        %v1458 = vpop.f32.mrf.mxu0
        %v1459 = vadd.f32 %v1375, %v1458
        %1460 = vmatmul.bf16.gmra.mxu0 %v1411
        %v1461 = vpop.f32.mrf.mxu0
        %v1462 = vadd.f32 %v1375, %v1461
        %v1463 = vpop.f32.mrf.mxu0
        %v1464 = vadd.f32 %v1375, %v1463
        %1465 = vmatmul.bf16.gmra.mxu0 %v1414
        %v1466 = vpop.f32.mrf.mxu0
        %v1467 = vadd.f32 %v1375, %v1466
        %v1468 = vpop.f32.mrf.mxu0
        %v1469 = vadd.f32 %v1375, %v1468
        %1470 = vdwg.mxu0
        %s1471 = sld [smem:[#allocation5]]
        %v1472 = vstv %s1471
        %v1473 = vmul.f32 %v1472, %v1432
        %v1474 = vmul.f32 %v1472, %v1434
        %v1475 = vmul.f32 %v1472, %v1437
        %v1476 = vmul.f32 %v1472, %v1439
        %v1477 = vmul.f32 %v1472, %v1442
        %v1478 = vmul.f32 %v1472, %v1444
        %v1479 = vmul.f32 %v1472, %v1447
        %v1480 = vmul.f32 %v1472, %v1449
        %v1481 = vmul.f32 %v1472, %v1452
        %v1482 = vmul.f32 %v1472, %v1454
        %v1483 = vmul.f32 %v1472, %v1457
        %v1484 = vmul.f32 %v1472, %v1459
        %v1485 = vmul.f32 %v1472, %v1462
        %v1486 = vmul.f32 %v1472, %v1464
        %v1487 = vmul.f32 %v1472, %v1467
        %v1488 = vmul.f32 %v1472, %v1469
        %v1489 = vld [vmem:[%s340] sm:$0xff]
        %v1490 = vld [vmem:[%s340 + $0x8] sm:$0xff]
        %v1491 = vld [vmem:[%s340 + $0x10] sm:$0xff]
        %v1492 = vld [vmem:[%s340 + $0x18] sm:$0xff]
        %v1493 = vld [vmem:[%s340 + $0x20] sm:$0xff]
        %v1494 = vld [vmem:[%s340 + $0x28] sm:$0xff]
        %v1495 = vld [vmem:[%s340 + $0x30] sm:$0xff]
        %v1496 = vld [vmem:[%s340 + $0x38] sm:$0xff]
        %v1497 = vld [vmem:[%s340 + $0x40] sm:$0xff]
        %v1498 = vld [vmem:[%s340 + $0x48] sm:$0xff]
        %v1499 = vld [vmem:[%s340 + $0x50] sm:$0xff]
        %v1500 = vld [vmem:[%s340 + $0x58] sm:$0xff]
        %v1501 = vld [vmem:[%s340 + $0x60] sm:$0xff]
        %v1502 = vld [vmem:[%s340 + $0x68] sm:$0xff]
        %v1503 = vld [vmem:[%s340 + $0x70] sm:$0xff]
        %v1504 = vld [vmem:[%s340 + $0x78] sm:$0xff]
        %v1505 = vadd.f32 %v1473, %v1489
        %v1506 = vadd.f32 %v1474, %v1490
        %v1507 = vadd.f32 %v1475, %v1491
        %v1508 = vadd.f32 %v1476, %v1492
        %v1509 = vadd.f32 %v1477, %v1493
        %v1510 = vadd.f32 %v1478, %v1494
        %v1511 = vadd.f32 %v1479, %v1495
        %v1512 = vadd.f32 %v1480, %v1496
        %v1513 = vadd.f32 %v1481, %v1497
        %v1514 = vadd.f32 %v1482, %v1498
        %v1515 = vadd.f32 %v1483, %v1499
        %v1516 = vadd.f32 %v1484, %v1500
        %v1517 = vadd.f32 %v1485, %v1501
        %v1518 = vadd.f32 %v1486, %v1502
        %v1519 = vadd.f32 %v1487, %v1503
        %v1520 = vadd.f32 %v1488, %v1504
        %vm1521 = vcmask 261120
        %1522 = vst.msk [vmem:[%s360] sm:$0xff] %vm1521, %v1505
        %1523 = vst.msk [vmem:[%s360 + $0x8] sm:$0xff] %vm1521, %v1506
        %1524 = vst.msk [vmem:[%s360 + $0x10] sm:$0xff] %vm1521, %v1507
        %1525 = vst.msk [vmem:[%s360 + $0x18] sm:$0xff] %vm1521, %v1508
        %1526 = vst.msk [vmem:[%s360 + $0x20] sm:$0xff] %vm1521, %v1509
        %1527 = vst.msk [vmem:[%s360 + $0x28] sm:$0xff] %vm1521, %v1510
        %1528 = vst.msk [vmem:[%s360 + $0x30] sm:$0xff] %vm1521, %v1511
        %1529 = vst.msk [vmem:[%s360 + $0x38] sm:$0xff] %vm1521, %v1512
        %1530 = vst.msk [vmem:[%s360 + $0x40] sm:$0xff] %vm1521, %v1513
        %1531 = vst.msk [vmem:[%s360 + $0x48] sm:$0xff] %vm1521, %v1514
        %1532 = vst.msk [vmem:[%s360 + $0x50] sm:$0xff] %vm1521, %v1515
        %1533 = vst.msk [vmem:[%s360 + $0x58] sm:$0xff] %vm1521, %v1516
        %1534 = vst.msk [vmem:[%s360 + $0x60] sm:$0xff] %vm1521, %v1517
        %1535 = vst.msk [vmem:[%s360 + $0x68] sm:$0xff] %vm1521, %v1518
        %1536 = vst.msk [vmem:[%s360 + $0x70] sm:$0xff] %vm1521, %v1519
        %1537 = vst.msk [vmem:[%s360 + $0x78] sm:$0xff] %vm1521, %v1520
      $region56: #{tpu_custom_call.1} parent=47 // pred_fallthru
        _
      %s1538 = smul.u32 16, %s25
      %p1539 = scmp.lt.s32.totalorder %s24, 1
      %s1540 = scalar_select %p1539, %s24, 1
      %p1541 = scmp.lt.s32.totalorder %s1538, 31
      %s1542 = scalar_select %p1541, %s1538, 31
      %s1543 = smul.addr %s1540, 32
      %s1544 = sadd.s32 %s1542, %s1543
      %s1545 = smul.addr %s1544, 8
      %s1546 = scalar_lea.vmem %s7, %s1545
      // Predicated region
      $region57: #{tpu_custom_call.1} parent=47 // pred_check
        %p1547 = pneg %p219
      $region58: #{tpu_custom_call.1} parent=47 // pred_check_branch
        %1549 = sbr.rel (%p1547) target = $region60
      $region59: #{tpu_custom_call.1} parent=47 // pred_region
        %s1550 = smul.u32 16, %s25
      $region60: #{tpu_custom_call.1} parent=47 // pred_fallthru
        _
    $region48: #{tpu_custom_call.1} parent=5 // pred_fallthru
      _
    %p1551 = scmp.le.s32.totalorder 2, %s14
    // Predicated region
    $region61: #{tpu_custom_call.1} parent=5 // pred_check
      %p1552 = pneg %p1551
    $region62: #{tpu_custom_call.1} parent=5 // pred_check_branch
      %1554 = sbr.rel (%p1552) target = $region64
    $region63: #{tpu_custom_call.1} parent=5 // pred_region
      %s1555 = ssub.s32 %s14, 2
      // Predicated region
      $region65: #{tpu_custom_call.1} parent=63 // pred_check
        %p1556 = pneg %p225
      $region66: #{tpu_custom_call.1} parent=63 // pred_check_branch
        %1558 = sbr.rel (%p1556) target = $region68
      $region67: #{tpu_custom_call.1} parent=63 // pred_region
        %s1559 = smul.u32 16, %s28
        %p1560 = scmp.lt.s32.totalorder %s27, 1
        %s1561 = scalar_select %p1560, %s27, 1
        %p1562 = scmp.lt.s32.totalorder %s1559, 31
        %s1563 = scalar_select %p1562, %s1559, 31
        %s1564 = smul.addr %s1561, 32
        %s1565 = sadd.s32 %s1563, %s1564
        %s1566 = smul.addr %s1565, 8
        %s1567 = scalar_lea.vmem %s7, %s1566
      $region68: #{tpu_custom_call.1} parent=63 // pred_fallthru
        _
    $region64: #{tpu_custom_call.1} parent=5 // pred_fallthru
      _
  $region6: #{tpu_custom_call.1} parent=0 // loop_footer
    %s18 = sadd.s32 1, %s14
  $region7: #{tpu_custom_call.1} parent=0 // loop_footer_branch
    %13 = sbr.rel target = $region3
  $region8: #{tpu_custom_call.1} parent=0 // loop_exit
    _

</llo_original>
